<compile_context>
chip_gen: v7x
topology: tpu7x:2x2x1
jax: 0.10.0
libtpu: 0.0.40
codegen_flags: <defaults>
</compile_context>

<pallas_src>
import functools

import jax
import jax.numpy as jnp
from jax import lax
from jax.experimental import pallas as pl
from jax.experimental.pallas import tpu as pltpu


K1, K2, K3 = 3, 5, 7
HALO1, HALO2, HALO3 = (K1 - 1) // 2, (K2 - 1) // 2, (K3 - 1) // 2   # 1, 2, 3
HALO = HALO1 + HALO2 + HALO3                                        # 6
WIN_EXTRA = 2 * HALO                                                # 12


def _round_up(x, m):
    return (x + m - 1) // m * m


def _fused_cnn_kernel(x_ref, w1_ref, w2_ref, w3_ref, s1_ref, s2_ref, s3_ref,
                      out_ref, h1_ref, h2_ref, *, L, TL):
    """One (batch, L-tile) step, channels-on-sublanes / sequence-on-lanes.

    x_ref  : (CinP, TL+12) bf16   zero-padded input window (6-col halo each side)
    w*_ref : (K, Cout_l, Cin_l) bf16   per-tap, BN-scale-folded conv weights
    s*_ref : (Cout_l, 1)  f32     folded BN shift (broadcast over lanes)
    out_ref: (Cout, TL)           this tile's output (lane-dense)
    h1_ref : (H, TL+10)   bf16    VMEM scratch: layer-1 output + conv2 halo
    h2_ref : (H, TL+6)    bf16    VMEM scratch: layer-2 output + conv3 halo
    """
    t = pl.program_id(1)
    row0 = t * TL
    n1 = TL + 2 * (HALO2 + HALO3)     # layer-1 columns this tile needs
    n2 = TL + 2 * HALO3               # layer-2 columns this tile needs

    def conv(w_ref, src_ref, K, n):
        # K accumulated MXU matmuls; RHS are tap-shifted REF slices (plain
        # loads, no value-level im2col / relayout).  Output is (Cout_l, n),
        # sequence on lanes, f32 accumulation.
        acc = jnp.dot(w_ref[0], src_ref[:, pl.ds(0, n)],
                      preferred_element_type=jnp.float32)
        for k in range(1, K):
            acc = acc + jnp.dot(w_ref[k], src_ref[:, pl.ds(k, n)],
                                preferred_element_type=jnp.float32)
        return acc

    def mask_cols(ref, first_col, n, touches_right):
        # Zero columns whose global position is outside [0, L).  Interior tiles
        # never need this, so it only runs on boundary tiles.
        @pl.when((t == 0) | touches_right)
        def _():
            g = lax.broadcasted_iota(jnp.int32, (1, n), 1) + first_col
            ref[...] = jnp.where((g >= 0) & (g < L), ref[...], 0).astype(ref.dtype)

    # ---- layer 1: conv k=3 (BN scale folded into W) + shift + ReLU ----------
    h1 = jnp.maximum(conv(w1_ref, x_ref, K1, n1) + s1_ref[...], 0.0)
    h1_ref[...] = h1.astype(h1_ref.dtype)
    mask_cols(h1_ref, row0 - (HALO2 + HALO3), n1,
              row0 + TL + HALO2 + HALO3 > L)

    # ---- layer 2: conv k=5 + shift + ReLU ------------------------------------
    h2 = jnp.maximum(conv(w2_ref, h1_ref, K2, n2) + s2_ref[...], 0.0)
    h2_ref[...] = h2.astype(h2_ref.dtype)
    mask_cols(h2_ref, row0 - HALO3, n2, row0 + TL + HALO3 > L)

    # ---- layer 3: conv k=7 + shift + ReLU ------------------------------------
    y = jnp.maximum(conv(w3_ref, h2_ref, K3, TL) + s3_ref[...], 0.0)
    out_ref[...] = y.astype(out_ref.dtype)


def cnn_block_forward(x, params, *, eps=1e-5, tile_l=2048, out_dtype=jnp.float32):
    """x: (B, L, feature_dim) f32 -> (B, L, 2*hidden) (PyTorch CNNBlock forward)."""
    B, L, Cin = x.shape
    H = params["l1"]["w"].shape[0]
    Cout = params["l3"]["w"].shape[0]
    CinP = max(8, _round_up(Cin, 8))          # pad tiny channel dim for alignment

    # Fold BN (running stats) into conv weights + a per-channel shift; rearrange
    # weights to per-tap (K, Cout, Cin) for the accumulated-matmul formulation.
    def fold(p, cin_pad=None):
        co, ci, k = p["w"].shape
        scale = p["gamma"] / jnp.sqrt(p["var"] + eps)                  # (co,)
        shift = scale * (p["b"] - p["mean"]) + p["beta"]               # (co,)
        w = p["w"] * scale[:, None, None]                              # (co,ci,k)
        if cin_pad is not None and cin_pad > ci:
            w = jnp.pad(w, ((0, 0), (0, cin_pad - ci), (0, 0)))
        wt = jnp.transpose(w, (2, 0, 1)).astype(jnp.bfloat16)          # (k,co,ci)
        return wt, shift.reshape(co, 1).astype(jnp.float32)

    w1t, s1 = fold(params["l1"], CinP)
    w2t, s2 = fold(params["l2"])
    w3t, s3 = fold(params["l3"])

    # Balanced sequence tiling: TL multiple of 128 (lane-dense output blocks),
    # derived from L so the last tile is not mostly padding; keep >= 2 grid
    # steps when possible so both v7x TensorCores get work.
    n_t = max(1, pl.cdiv(L, tile_l))
    if B * n_t < 2 and L > 256:
        n_t = 2
    TL = _round_up(pl.cdiv(L, n_t), 128)
    n_t = pl.cdiv(L, TL)
    L_pad = n_t * TL
    win = TL + WIN_EXTRA
    n1 = TL + 2 * (HALO2 + HALO3)
    n2 = TL + 2 * HALO3

    # Channels-first, zero-padded (halo + tile padding), bf16 for the MXU.
    xt = jnp.transpose(x, (0, 2, 1)).astype(jnp.bfloat16)              # (B,Cin,L)
    xt = jnp.pad(xt, ((0, 0), (0, CinP - Cin), (HALO, HALO + L_pad - L)))
    # Per-tile overlapping windows of the tiny CinP-channel input (cheap; rows
    # are long & contiguous in this layout, and BlockSpec auto-pipelines them).
    idx = (jnp.arange(n_t) * TL)[:, None] + jnp.arange(win)[None, :]
    xwin = jnp.transpose(xt[:, :, idx], (0, 2, 1, 3))                  # (B,n_t,CinP,win)

    kernel = functools.partial(_fused_cnn_kernel, L=L, TL=TL)

    out = pl.pallas_call(
        kernel,
        out_shape=jax.ShapeDtypeStruct((B, Cout, L_pad), out_dtype),
        grid_spec=pltpu.PrefetchScalarGridSpec(
            num_scalar_prefetch=0,
            grid=(B, n_t),
            in_specs=[
                pl.BlockSpec((None, None, CinP, win), lambda b, t: (b, t, 0, 0)),
                pl.BlockSpec(w1t.shape, lambda b, t: (0, 0, 0)),
                pl.BlockSpec(w2t.shape, lambda b, t: (0, 0, 0)),
                pl.BlockSpec(w3t.shape, lambda b, t: (0, 0, 0)),
                pl.BlockSpec(s1.shape, lambda b, t: (0, 0)),
                pl.BlockSpec(s2.shape, lambda b, t: (0, 0)),
                pl.BlockSpec(s3.shape, lambda b, t: (0, 0)),
            ],
            out_specs=pl.BlockSpec((None, Cout, TL), lambda b, t: (b, 0, t)),
            scratch_shapes=[
                pltpu.VMEM((H, n1), jnp.bfloat16),   # h1 (layer-1 output + halo)
                pltpu.VMEM((H, n2), jnp.bfloat16),   # h2 (layer-2 output + halo)
            ],
        ),
        compiler_params=pltpu.CompilerParams(
            dimension_semantics=("parallel", "parallel"),
            vmem_limit_bytes=32 * 1024 * 1024,
        ),
    )(xwin, w1t, w2t, w3t, s1, s2, s3)

    # Back to the module's channels-last output layout, drop tile padding.
    return jnp.transpose(out[:, :, :L], (0, 2, 1)).astype(jnp.float32)


# ---------------------------------------------------------------------------
# deterministic parameter construction (mirrors nn.Conv1d / nn.BatchNorm1d)
# ---------------------------------------------------------------------------
def init_layer(key, cin, cout, k):
    kw, kb, kg, kbeta, km, kv = jax.random.split(key, 6)
    bound = 1.0 / jnp.sqrt(cin * k)
    return dict(
        w=jax.random.uniform(kw, (cout, cin, k), jnp.float32, -bound, bound),
        b=jax.random.uniform(kb, (cout,), jnp.float32, -bound, bound),
        gamma=1.0 + 0.1 * jax.random.normal(kg, (cout,), jnp.float32),
        beta=0.1 * jax.random.normal(kbeta, (cout,), jnp.float32),
        mean=0.1 * jax.random.normal(km, (cout,), jnp.float32),
        var=1.0 + 0.1 * jax.random.uniform(kv, (cout,), jnp.float32),
    )


# pure-JAX f32 reference (lax conv) to sanity-check the Pallas path
def ref_conv_bn_relu(x_blc, p, eps=1e-5):
    x_bcl = jnp.transpose(x_blc, (0, 2, 1))                    # NCW
    y = lax.conv_general_dilated(
        x_bcl, p["w"], window_strides=(1,),
        padding=[((p["w"].shape[2] - 1) // 2,) * 2],
        dimension_numbers=("NCH", "OIH", "NCH"))
    y = y + p["b"][None, :, None]
    scale = p["gamma"] / jnp.sqrt(p["var"] + eps)
    y = (y - p["mean"][None, :, None]) * scale[None, :, None] + p["beta"][None, :, None]
    y = jnp.maximum(y, 0.0)
    return jnp.transpose(y, (0, 2, 1))


def ref_forward(x, params):
    h = x
    for layer in ("l1", "l2", "l3"):
        h = ref_conv_bn_relu(h, params[layer])
    return h


if __name__ == "__main__":
    feature_dim, hidden, B, L = 4, 32, 2, 16

    key = jax.random.PRNGKey(0)
    kx, kx2, k1, k2, k3 = jax.random.split(key, 5)

    params = {
        "l1": init_layer(k1, feature_dim, hidden, 3),
        "l2": init_layer(k2, hidden, hidden, 5),
        "l3": init_layer(k3, hidden, 2 * hidden, 7),
    }

    # primary small-shape test (single tile)
    x = jax.random.normal(kx, (B, L, feature_dim), jnp.float32)
    ref = ref_forward(x, params)
    out_a = jax.block_until_ready(jax.jit(cnn_block_forward)(x, params))
    assert out_a.shape == (B, L, 2 * hidden), out_a.shape
    # bf16 MXU operands with f32 accumulation -> small drift vs the f32 reference
    assert jnp.allclose(out_a, ref, rtol=5e-2, atol=5e-2), "single-tile mismatch"

    # multi-tile test: 3 tiles of 128 rows -> exercises the halo ref-taps, the
    # interior-tile (mask-skipped) path, and both boundary-masking paths.
    x2 = jax.random.normal(kx2, (1, 300, feature_dim), jnp.float32)
    ref2 = ref_forward(x2, params)
    out_b = jax.block_until_ready(
        jax.jit(functools.partial(cnn_block_forward, tile_l=128))(x2, params))
    assert out_b.shape == (1, 300, 2 * hidden), out_b.shape
    assert jnp.allclose(out_b, ref2, rtol=5e-2, atol=5e-2), "multi-tile mismatch"

    print("KERNEL_OK")
</pallas_src>

<mosaic_0001>
module attributes {stable_mosaic.version = 11 : i64} {
  func.func @_fused_cnn_kernel(%arg0: i32, %arg1: i32, %arg2: memref<1x1x8x140xbf16, #tpu.memory_space<vmem>>, %arg3: memref<3x32x8xbf16, #tpu.memory_space<vmem>>, %arg4: memref<5x32x32xbf16, #tpu.memory_space<vmem>>, %arg5: memref<7x64x32xbf16, #tpu.memory_space<vmem>>, %arg6: memref<32x1xf32, #tpu.memory_space<vmem>>, %arg7: memref<32x1xf32, #tpu.memory_space<vmem>>, %arg8: memref<64x1xf32, #tpu.memory_space<vmem>>, %arg9: memref<1x64x128xf32, #tpu.memory_space<vmem>>, %arg10: memref<32x138xbf16, #tpu.memory_space<vmem>>, %arg11: memref<32x134xbf16, #tpu.memory_space<vmem>>) attributes {dimension_semantics = [#tpu.dimension_semantics<parallel>, #tpu.dimension_semantics<parallel>], iteration_bounds = array<i64: 2, 1>, scalar_prefetch = 0 : i64, scratch_operands = 2 : i64, tpu.core_type = #tpu.core_type<tc>, window_params = [{transform_indices = @transform_0, window_bounds = array<i64: 1, 1, 8, 140>}, {pipeline_mode = #tpu.pipeline_mode<synchronous>, transform_indices = @transform_1, window_bounds = array<i64: 3, 32, 8>}, {pipeline_mode = #tpu.pipeline_mode<synchronous>, transform_indices = @transform_2, window_bounds = array<i64: 5, 32, 32>}, {pipeline_mode = #tpu.pipeline_mode<synchronous>, transform_indices = @transform_3, window_bounds = array<i64: 7, 64, 32>}, {pipeline_mode = #tpu.pipeline_mode<synchronous>, transform_indices = @transform_4, window_bounds = array<i64: 32, 1>}, {pipeline_mode = #tpu.pipeline_mode<synchronous>, transform_indices = @transform_5, window_bounds = array<i64: 32, 1>}, {pipeline_mode = #tpu.pipeline_mode<synchronous>, transform_indices = @transform_6, window_bounds = array<i64: 64, 1>}, {transform_indices = @transform_7, window_bounds = array<i64: 1, 64, 128>}]} {
    %c128_i32 = arith.constant 128 : i32
    %0 = arith.muli %arg1, %c128_i32 : i32
    %c0 = arith.constant 0 : index
    %c0_0 = arith.constant 0 : index
    %c0_1 = arith.constant 0 : index
    %1 = vector.load %arg3[%c0, %c0_0, %c0_1] : memref<3x32x8xbf16, #tpu.memory_space<vmem>>, vector<1x32x8xbf16>
    %2 = vector.shape_cast %1 : vector<1x32x8xbf16> to vector<32x8xbf16>
    %c0_2 = arith.constant 0 : index
    %c0_3 = arith.constant 0 : index
    %c0_4 = arith.constant 0 : index
    %c0_5 = arith.constant 0 : index
    %3 = vector.load %arg2[%c0_2, %c0_3, %c0_4, %c0_5] : memref<1x1x8x140xbf16, #tpu.memory_space<vmem>>, vector<1x1x8x138xbf16>
    %4 = vector.shape_cast %3 : vector<1x1x8x138xbf16> to vector<8x138xbf16>
    %cst = arith.constant dense<0.000000e+00> : vector<32x138xf32>
    %5 = tpu.matmul %2, %4, %cst {dimension_numbers = #tpu.dot_dimension_numbers<[1], [0], [0], [1], [0, 0, 1, 1], [], []>} : vector<32x8xbf16>, vector<8x138xbf16>, vector<32x138xf32> -> vector<32x138xf32>
    %c1 = arith.constant 1 : index
    %c0_6 = arith.constant 0 : index
    %c0_7 = arith.constant 0 : index
    %6 = vector.load %arg3[%c1, %c0_6, %c0_7] : memref<3x32x8xbf16, #tpu.memory_space<vmem>>, vector<1x32x8xbf16>
    %7 = vector.shape_cast %6 : vector<1x32x8xbf16> to vector<32x8xbf16>
    %c0_8 = arith.constant 0 : index
    %c0_9 = arith.constant 0 : index
    %c0_10 = arith.constant 0 : index
    %c1_11 = arith.constant 1 : index
    %8 = vector.load %arg2[%c0_8, %c0_9, %c0_10, %c1_11] : memref<1x1x8x140xbf16, #tpu.memory_space<vmem>>, vector<1x1x8x138xbf16>
    %9 = vector.shape_cast %8 : vector<1x1x8x138xbf16> to vector<8x138xbf16>
    %cst_12 = arith.constant dense<0.000000e+00> : vector<32x138xf32>
    %10 = tpu.matmul %7, %9, %cst_12 {dimension_numbers = #tpu.dot_dimension_numbers<[1], [0], [0], [1], [0, 0, 1, 1], [], []>} : vector<32x8xbf16>, vector<8x138xbf16>, vector<32x138xf32> -> vector<32x138xf32>
    %11 = arith.addf %5, %10 : vector<32x138xf32>
    %c2 = arith.constant 2 : index
    %c0_13 = arith.constant 0 : index
    %c0_14 = arith.constant 0 : index
    %12 = vector.load %arg3[%c2, %c0_13, %c0_14] : memref<3x32x8xbf16, #tpu.memory_space<vmem>>, vector<1x32x8xbf16>
    %13 = vector.shape_cast %12 : vector<1x32x8xbf16> to vector<32x8xbf16>
    %c0_15 = arith.constant 0 : index
    %c0_16 = arith.constant 0 : index
    %c0_17 = arith.constant 0 : index
    %c2_18 = arith.constant 2 : index
    %14 = vector.load %arg2[%c0_15, %c0_16, %c0_17, %c2_18] : memref<1x1x8x140xbf16, #tpu.memory_space<vmem>>, vector<1x1x8x138xbf16>
    %15 = vector.shape_cast %14 : vector<1x1x8x138xbf16> to vector<8x138xbf16>
    %cst_19 = arith.constant dense<0.000000e+00> : vector<32x138xf32>
    %16 = tpu.matmul %13, %15, %cst_19 {dimension_numbers = #tpu.dot_dimension_numbers<[1], [0], [0], [1], [0, 0, 1, 1], [], []>} : vector<32x8xbf16>, vector<8x138xbf16>, vector<32x138xf32> -> vector<32x138xf32>
    %17 = arith.addf %11, %16 : vector<32x138xf32>
    %c0_20 = arith.constant 0 : index
    %c0_21 = arith.constant 0 : index
    %18 = vector.load %arg6[%c0_20, %c0_21] : memref<32x1xf32, #tpu.memory_space<vmem>>, vector<32x1xf32>
    %19 = vector.broadcast %18 : vector<32x1xf32> to vector<32x138xf32>
    %20 = arith.addf %17, %19 : vector<32x138xf32>
    %cst_22 = arith.constant 0.000000e+00 : f32
    %21 = vector.broadcast %cst_22 : f32 to vector<32x138xf32>
    %22 = arith.maximumf %20, %21 : vector<32x138xf32>
    %23 = arith.truncf %22 : vector<32x138xf32> to vector<32x138xbf16>
    %c0_23 = arith.constant 0 : index
    %c0_24 = arith.constant 0 : index
    %24 = vector.load %arg10[%c0_23, %c0_24] : memref<32x138xbf16, #tpu.memory_space<vmem>>, vector<32x138xbf16>
    tpu.vector_store %arg10[%c0_23, %c0_24], %23 {strides = array<i32>} : memref<32x138xbf16, #tpu.memory_space<vmem>>, vector<32x138xbf16>,
    %c5_i32 = arith.constant 5 : i32
    %25 = arith.subi %0, %c5_i32 : i32
    %c128_i32_25 = arith.constant 128 : i32
    %26 = arith.addi %0, %c128_i32_25 : i32
    %c2_i32 = arith.constant 2 : i32
    %27 = arith.addi %26, %c2_i32 : i32
    %c3_i32 = arith.constant 3 : i32
    %28 = arith.addi %27, %c3_i32 : i32
    %c16_i32 = arith.constant 16 : i32
    %29 = arith.cmpi sgt, %28, %c16_i32 : i32
    %c0_i32 = arith.constant 0 : i32
    %30 = arith.cmpi eq, %arg1, %c0_i32 : i32
    %31 = arith.ori %30, %29 : i1
    %32 = arith.extui %31 : i1 to i32
    %c0_i32_26 = arith.constant 0 : i32
    %33 = arith.cmpi ne, %32, %c0_i32_26 : i32
    scf.if %33 {
      %115 = tpu.iota {dimensions = array<i32: 1>} : vector<1x138xi32>
      %116 = vector.broadcast %25 : i32 to vector<1x138xi32>
      %117 = arith.addi %115, %116 : vector<1x138xi32>
      %c0_i32_112 = arith.constant 0 : i32
      %118 = vector.broadcast %c0_i32_112 : i32 to vector<1x138xi32>
      %119 = arith.cmpi sge, %117, %118 : vector<1x138xi32>
      %c16_i32_113 = arith.constant 16 : i32
      %120 = vector.broadcast %c16_i32_113 : i32 to vector<1x138xi32>
      %121 = arith.cmpi slt, %117, %120 : vector<1x138xi32>
      %122 = arith.andi %119, %121 : vector<1x138xi1>
      %c0_114 = arith.constant 0 : index
      %c0_115 = arith.constant 0 : index
      %123 = vector.load %arg10[%c0_114, %c0_115] : memref<32x138xbf16, #tpu.memory_space<vmem>>, vector<32x138xbf16>
      %c0_i32_116 = arith.constant 0 : i32
      %124 = arith.sitofp %c0_i32_116 : i32 to bf16
      %125 = vector.shape_cast %122 : vector<1x138xi1> to vector<1x138xi1>
      %126 = vector.broadcast %125 : vector<1x138xi1> to vector<32x138xi1>
      %127 = vector.broadcast %124 : bf16 to vector<32x138xbf16>
      %128 = arith.select %126, %123, %127 : vector<32x138xi1>, vector<32x138xbf16>
      %c0_117 = arith.constant 0 : index
      %c0_118 = arith.constant 0 : index
      %129 = vector.load %arg10[%c0_117, %c0_118] : memref<32x138xbf16, #tpu.memory_space<vmem>>, vector<32x138xbf16>
      tpu.vector_store %arg10[%c0_117, %c0_118], %128 {strides = array<i32>} : memref<32x138xbf16, #tpu.memory_space<vmem>>, vector<32x138xbf16>,
    } else {
    }
    %c0_27 = arith.constant 0 : index
    %c0_28 = arith.constant 0 : index
    %c0_29 = arith.constant 0 : index
    %34 = vector.load %arg4[%c0_27, %c0_28, %c0_29] : memref<5x32x32xbf16, #tpu.memory_space<vmem>>, vector<1x32x32xbf16>
    %35 = vector.shape_cast %34 : vector<1x32x32xbf16> to vector<32x32xbf16>
    %c0_30 = arith.constant 0 : index
    %c0_31 = arith.constant 0 : index
    %36 = vector.load %arg10[%c0_30, %c0_31] : memref<32x138xbf16, #tpu.memory_space<vmem>>, vector<32x134xbf16>
    %cst_32 = arith.constant dense<0.000000e+00> : vector<32x134xf32>
    %37 = tpu.matmul %35, %36, %cst_32 {dimension_numbers = #tpu.dot_dimension_numbers<[1], [0], [0], [1], [0, 0, 1, 1], [], []>} : vector<32x32xbf16>, vector<32x134xbf16>, vector<32x134xf32> -> vector<32x134xf32>
    %c1_33 = arith.constant 1 : index
    %c0_34 = arith.constant 0 : index
    %c0_35 = arith.constant 0 : index
    %38 = vector.load %arg4[%c1_33, %c0_34, %c0_35] : memref<5x32x32xbf16, #tpu.memory_space<vmem>>, vector<1x32x32xbf16>
    %39 = vector.shape_cast %38 : vector<1x32x32xbf16> to vector<32x32xbf16>
    %c0_36 = arith.constant 0 : index
    %c1_37 = arith.constant 1 : index
    %40 = vector.load %arg10[%c0_36, %c1_37] : memref<32x138xbf16, #tpu.memory_space<vmem>>, vector<32x134xbf16>
    %cst_38 = arith.constant dense<0.000000e+00> : vector<32x134xf32>
    %41 = tpu.matmul %39, %40, %cst_38 {dimension_numbers = #tpu.dot_dimension_numbers<[1], [0], [0], [1], [0, 0, 1, 1], [], []>} : vector<32x32xbf16>, vector<32x134xbf16>, vector<32x134xf32> -> vector<32x134xf32>
    %42 = arith.addf %37, %41 : vector<32x134xf32>
    %c2_39 = arith.constant 2 : index
    %c0_40 = arith.constant 0 : index
    %c0_41 = arith.constant 0 : index
    %43 = vector.load %arg4[%c2_39, %c0_40, %c0_41] : memref<5x32x32xbf16, #tpu.memory_space<vmem>>, vector<1x32x32xbf16>
    %44 = vector.shape_cast %43 : vector<1x32x32xbf16> to vector<32x32xbf16>
    %c0_42 = arith.constant 0 : index
    %c2_43 = arith.constant 2 : index
    %45 = vector.load %arg10[%c0_42, %c2_43] : memref<32x138xbf16, #tpu.memory_space<vmem>>, vector<32x134xbf16>
    %cst_44 = arith.constant dense<0.000000e+00> : vector<32x134xf32>
    %46 = tpu.matmul %44, %45, %cst_44 {dimension_numbers = #tpu.dot_dimension_numbers<[1], [0], [0], [1], [0, 0, 1, 1], [], []>} : vector<32x32xbf16>, vector<32x134xbf16>, vector<32x134xf32> -> vector<32x134xf32>
    %47 = arith.addf %42, %46 : vector<32x134xf32>
    %c3 = arith.constant 3 : index
    %c0_45 = arith.constant 0 : index
    %c0_46 = arith.constant 0 : index
    %48 = vector.load %arg4[%c3, %c0_45, %c0_46] : memref<5x32x32xbf16, #tpu.memory_space<vmem>>, vector<1x32x32xbf16>
    %49 = vector.shape_cast %48 : vector<1x32x32xbf16> to vector<32x32xbf16>
    %c0_47 = arith.constant 0 : index
    %c3_48 = arith.constant 3 : index
    %50 = vector.load %arg10[%c0_47, %c3_48] : memref<32x138xbf16, #tpu.memory_space<vmem>>, vector<32x134xbf16>
    %cst_49 = arith.constant dense<0.000000e+00> : vector<32x134xf32>
    %51 = tpu.matmul %49, %50, %cst_49 {dimension_numbers = #tpu.dot_dimension_numbers<[1], [0], [0], [1], [0, 0, 1, 1], [], []>} : vector<32x32xbf16>, vector<32x134xbf16>, vector<32x134xf32> -> vector<32x134xf32>
    %52 = arith.addf %47, %51 : vector<32x134xf32>
    %c4 = arith.constant 4 : index
    %c0_50 = arith.constant 0 : index
    %c0_51 = arith.constant 0 : index
    %53 = vector.load %arg4[%c4, %c0_50, %c0_51] : memref<5x32x32xbf16, #tpu.memory_space<vmem>>, vector<1x32x32xbf16>
    %54 = vector.shape_cast %53 : vector<1x32x32xbf16> to vector<32x32xbf16>
    %c0_52 = arith.constant 0 : index
    %c4_53 = arith.constant 4 : index
    %55 = vector.load %arg10[%c0_52, %c4_53] : memref<32x138xbf16, #tpu.memory_space<vmem>>, vector<32x134xbf16>
    %cst_54 = arith.constant dense<0.000000e+00> : vector<32x134xf32>
    %56 = tpu.matmul %54, %55, %cst_54 {dimension_numbers = #tpu.dot_dimension_numbers<[1], [0], [0], [1], [0, 0, 1, 1], [], []>} : vector<32x32xbf16>, vector<32x134xbf16>, vector<32x134xf32> -> vector<32x134xf32>
    %57 = arith.addf %52, %56 : vector<32x134xf32>
    %c0_55 = arith.constant 0 : index
    %c0_56 = arith.constant 0 : index
    %58 = vector.load %arg7[%c0_55, %c0_56] : memref<32x1xf32, #tpu.memory_space<vmem>>, vector<32x1xf32>
    %59 = vector.broadcast %58 : vector<32x1xf32> to vector<32x134xf32>
    %60 = arith.addf %57, %59 : vector<32x134xf32>
    %cst_57 = arith.constant 0.000000e+00 : f32
    %61 = vector.broadcast %cst_57 : f32 to vector<32x134xf32>
    %62 = arith.maximumf %60, %61 : vector<32x134xf32>
    %63 = arith.truncf %62 : vector<32x134xf32> to vector<32x134xbf16>
    %c0_58 = arith.constant 0 : index
    %c0_59 = arith.constant 0 : index
    %64 = vector.load %arg11[%c0_58, %c0_59] : memref<32x134xbf16, #tpu.memory_space<vmem>>, vector<32x134xbf16>
    tpu.vector_store %arg11[%c0_58, %c0_59], %63 {strides = array<i32>} : memref<32x134xbf16, #tpu.memory_space<vmem>>, vector<32x134xbf16>,
    %c3_i32_60 = arith.constant 3 : i32
    %65 = arith.subi %0, %c3_i32_60 : i32
    %c128_i32_61 = arith.constant 128 : i32
    %66 = arith.addi %0, %c128_i32_61 : i32
    %c3_i32_62 = arith.constant 3 : i32
    %67 = arith.addi %66, %c3_i32_62 : i32
    %c16_i32_63 = arith.constant 16 : i32
    %68 = arith.cmpi sgt, %67, %c16_i32_63 : i32
    %c0_i32_64 = arith.constant 0 : i32
    %69 = arith.cmpi eq, %arg1, %c0_i32_64 : i32
    %70 = arith.ori %69, %68 : i1
    %71 = arith.extui %70 : i1 to i32
    %c0_i32_65 = arith.constant 0 : i32
    %72 = arith.cmpi ne, %71, %c0_i32_65 : i32
    scf.if %72 {
      %115 = tpu.iota {dimensions = array<i32: 1>} : vector<1x134xi32>
      %116 = vector.broadcast %65 : i32 to vector<1x134xi32>
      %117 = arith.addi %115, %116 : vector<1x134xi32>
      %c0_i32_112 = arith.constant 0 : i32
      %118 = vector.broadcast %c0_i32_112 : i32 to vector<1x134xi32>
      %119 = arith.cmpi sge, %117, %118 : vector<1x134xi32>
      %c16_i32_113 = arith.constant 16 : i32
      %120 = vector.broadcast %c16_i32_113 : i32 to vector<1x134xi32>
      %121 = arith.cmpi slt, %117, %120 : vector<1x134xi32>
      %122 = arith.andi %119, %121 : vector<1x134xi1>
      %c0_114 = arith.constant 0 : index
      %c0_115 = arith.constant 0 : index
      %123 = vector.load %arg11[%c0_114, %c0_115] : memref<32x134xbf16, #tpu.memory_space<vmem>>, vector<32x134xbf16>
      %c0_i32_116 = arith.constant 0 : i32
      %124 = arith.sitofp %c0_i32_116 : i32 to bf16
      %125 = vector.shape_cast %122 : vector<1x134xi1> to vector<1x134xi1>
      %126 = vector.broadcast %125 : vector<1x134xi1> to vector<32x134xi1>
      %127 = vector.broadcast %124 : bf16 to vector<32x134xbf16>
      %128 = arith.select %126, %123, %127 : vector<32x134xi1>, vector<32x134xbf16>
      %c0_117 = arith.constant 0 : index
      %c0_118 = arith.constant 0 : index
      %129 = vector.load %arg11[%c0_117, %c0_118] : memref<32x134xbf16, #tpu.memory_space<vmem>>, vector<32x134xbf16>
      tpu.vector_store %arg11[%c0_117, %c0_118], %128 {strides = array<i32>} : memref<32x134xbf16, #tpu.memory_space<vmem>>, vector<32x134xbf16>,
    } else {
    }
    %c0_66 = arith.constant 0 : index
    %c0_67 = arith.constant 0 : index
    %c0_68 = arith.constant 0 : index
    %73 = vector.load %arg5[%c0_66, %c0_67, %c0_68] : memref<7x64x32xbf16, #tpu.memory_space<vmem>>, vector<1x64x32xbf16>
    %74 = vector.shape_cast %73 : vector<1x64x32xbf16> to vector<64x32xbf16>
    %c0_69 = arith.constant 0 : index
    %c0_70 = arith.constant 0 : index
    %75 = vector.load %arg11[%c0_69, %c0_70] : memref<32x134xbf16, #tpu.memory_space<vmem>>, vector<32x128xbf16>
    %cst_71 = arith.constant dense<0.000000e+00> : vector<64x128xf32>
    %76 = tpu.matmul %74, %75, %cst_71 {dimension_numbers = #tpu.dot_dimension_numbers<[1], [0], [0], [1], [0, 0, 1, 1], [], []>} : vector<64x32xbf16>, vector<32x128xbf16>, vector<64x128xf32> -> vector<64x128xf32>
    %c1_72 = arith.constant 1 : index
    %c0_73 = arith.constant 0 : index
    %c0_74 = arith.constant 0 : index
    %77 = vector.load %arg5[%c1_72, %c0_73, %c0_74] : memref<7x64x32xbf16, #tpu.memory_space<vmem>>, vector<1x64x32xbf16>
    %78 = vector.shape_cast %77 : vector<1x64x32xbf16> to vector<64x32xbf16>
    %c0_75 = arith.constant 0 : index
    %c1_76 = arith.constant 1 : index
    %79 = vector.load %arg11[%c0_75, %c1_76] : memref<32x134xbf16, #tpu.memory_space<vmem>>, vector<32x128xbf16>
    %cst_77 = arith.constant dense<0.000000e+00> : vector<64x128xf32>
    %80 = tpu.matmul %78, %79, %cst_77 {dimension_numbers = #tpu.dot_dimension_numbers<[1], [0], [0], [1], [0, 0, 1, 1], [], []>} : vector<64x32xbf16>, vector<32x128xbf16>, vector<64x128xf32> -> vector<64x128xf32>
    %81 = arith.addf %76, %80 : vector<64x128xf32>
    %c2_78 = arith.constant 2 : index
    %c0_79 = arith.constant 0 : index
    %c0_80 = arith.constant 0 : index
    %82 = vector.load %arg5[%c2_78, %c0_79, %c0_80] : memref<7x64x32xbf16, #tpu.memory_space<vmem>>, vector<1x64x32xbf16>
    %83 = vector.shape_cast %82 : vector<1x64x32xbf16> to vector<64x32xbf16>
    %c0_81 = arith.constant 0 : index
    %c2_82 = arith.constant 2 : index
    %84 = vector.load %arg11[%c0_81, %c2_82] : memref<32x134xbf16, #tpu.memory_space<vmem>>, vector<32x128xbf16>
    %cst_83 = arith.constant dense<0.000000e+00> : vector<64x128xf32>
    %85 = tpu.matmul %83, %84, %cst_83 {dimension_numbers = #tpu.dot_dimension_numbers<[1], [0], [0], [1], [0, 0, 1, 1], [], []>} : vector<64x32xbf16>, vector<32x128xbf16>, vector<64x128xf32> -> vector<64x128xf32>
    %86 = arith.addf %81, %85 : vector<64x128xf32>
    %c3_84 = arith.constant 3 : index
    %c0_85 = arith.constant 0 : index
    %c0_86 = arith.constant 0 : index
    %87 = vector.load %arg5[%c3_84, %c0_85, %c0_86] : memref<7x64x32xbf16, #tpu.memory_space<vmem>>, vector<1x64x32xbf16>
    %88 = vector.shape_cast %87 : vector<1x64x32xbf16> to vector<64x32xbf16>
    %c0_87 = arith.constant 0 : index
    %c3_88 = arith.constant 3 : index
    %89 = vector.load %arg11[%c0_87, %c3_88] : memref<32x134xbf16, #tpu.memory_space<vmem>>, vector<32x128xbf16>
    %cst_89 = arith.constant dense<0.000000e+00> : vector<64x128xf32>
    %90 = tpu.matmul %88, %89, %cst_89 {dimension_numbers = #tpu.dot_dimension_numbers<[1], [0], [0], [1], [0, 0, 1, 1], [], []>} : vector<64x32xbf16>, vector<32x128xbf16>, vector<64x128xf32> -> vector<64x128xf32>
    %91 = arith.addf %86, %90 : vector<64x128xf32>
    %c4_90 = arith.constant 4 : index
    %c0_91 = arith.constant 0 : index
    %c0_92 = arith.constant 0 : index
    %92 = vector.load %arg5[%c4_90, %c0_91, %c0_92] : memref<7x64x32xbf16, #tpu.memory_space<vmem>>, vector<1x64x32xbf16>
    %93 = vector.shape_cast %92 : vector<1x64x32xbf16> to vector<64x32xbf16>
    %c0_93 = arith.constant 0 : index
    %c4_94 = arith.constant 4 : index
    %94 = vector.load %arg11[%c0_93, %c4_94] : memref<32x134xbf16, #tpu.memory_space<vmem>>, vector<32x128xbf16>
    %cst_95 = arith.constant dense<0.000000e+00> : vector<64x128xf32>
    %95 = tpu.matmul %93, %94, %cst_95 {dimension_numbers = #tpu.dot_dimension_numbers<[1], [0], [0], [1], [0, 0, 1, 1], [], []>} : vector<64x32xbf16>, vector<32x128xbf16>, vector<64x128xf32> -> vector<64x128xf32>
    %96 = arith.addf %91, %95 : vector<64x128xf32>
    %c5 = arith.constant 5 : index
    %c0_96 = arith.constant 0 : index
    %c0_97 = arith.constant 0 : index
    %97 = vector.load %arg5[%c5, %c0_96, %c0_97] : memref<7x64x32xbf16, #tpu.memory_space<vmem>>, vector<1x64x32xbf16>
    %98 = vector.shape_cast %97 : vector<1x64x32xbf16> to vector<64x32xbf16>
    %c0_98 = arith.constant 0 : index
    %c5_99 = arith.constant 5 : index
    %99 = vector.load %arg11[%c0_98, %c5_99] : memref<32x134xbf16, #tpu.memory_space<vmem>>, vector<32x128xbf16>
    %cst_100 = arith.constant dense<0.000000e+00> : vector<64x128xf32>
    %100 = tpu.matmul %98, %99, %cst_100 {dimension_numbers = #tpu.dot_dimension_numbers<[1], [0], [0], [1], [0, 0, 1, 1], [], []>} : vector<64x32xbf16>, vector<32x128xbf16>, vector<64x128xf32> -> vector<64x128xf32>
    %101 = arith.addf %96, %100 : vector<64x128xf32>
    %c6 = arith.constant 6 : index
    %c0_101 = arith.constant 0 : index
    %c0_102 = arith.constant 0 : index
    %102 = vector.load %arg5[%c6, %c0_101, %c0_102] : memref<7x64x32xbf16, #tpu.memory_space<vmem>>, vector<1x64x32xbf16>
    %103 = vector.shape_cast %102 : vector<1x64x32xbf16> to vector<64x32xbf16>
    %c0_103 = arith.constant 0 : index
    %c6_104 = arith.constant 6 : index
    %104 = vector.load %arg11[%c0_103, %c6_104] : memref<32x134xbf16, #tpu.memory_space<vmem>>, vector<32x128xbf16>
    %cst_105 = arith.constant dense<0.000000e+00> : vector<64x128xf32>
    %105 = tpu.matmul %103, %104, %cst_105 {dimension_numbers = #tpu.dot_dimension_numbers<[1], [0], [0], [1], [0, 0, 1, 1], [], []>} : vector<64x32xbf16>, vector<32x128xbf16>, vector<64x128xf32> -> vector<64x128xf32>
    %106 = arith.addf %101, %105 : vector<64x128xf32>
    %c0_106 = arith.constant 0 : index
    %c0_107 = arith.constant 0 : index
    %107 = vector.load %arg8[%c0_106, %c0_107] : memref<64x1xf32, #tpu.memory_space<vmem>>, vector<64x1xf32>
    %108 = vector.broadcast %107 : vector<64x1xf32> to vector<64x128xf32>
    %109 = arith.addf %106, %108 : vector<64x128xf32>
    %cst_108 = arith.constant 0.000000e+00 : f32
    %110 = vector.broadcast %cst_108 : f32 to vector<64x128xf32>
    %111 = arith.maximumf %109, %110 : vector<64x128xf32>
    %c0_109 = arith.constant 0 : index
    %c0_110 = arith.constant 0 : index
    %c0_111 = arith.constant 0 : index
    %112 = vector.load %arg9[%c0_109, %c0_110, %c0_111] : memref<1x64x128xf32, #tpu.memory_space<vmem>>, vector<1x64x128xf32>
    %113 = vector.shape_cast %112 : vector<1x64x128xf32> to vector<64x128xf32>
    %114 = vector.shape_cast %111 : vector<64x128xf32> to vector<1x64x128xf32>
    tpu.vector_store %arg9[%c0_109, %c0_110, %c0_111], %114 {strides = array<i32>} : memref<1x64x128xf32, #tpu.memory_space<vmem>>, vector<1x64x128xf32>,
    return
  }
  func.func @transform_0(%arg0: i32, %arg1: i32) -> (i32, i32, i32, i32) {
    %c0_i32 = arith.constant 0 : i32
    %c0_i32_0 = arith.constant 0 : i32
    %c0_i32_1 = arith.constant 0 : i32
    return %arg0, %arg1, %c0_i32, %c0_i32_0 : i32, i32, i32, i32
  }
  func.func @transform_1(%arg0: i32, %arg1: i32) -> (i32, i32, i32) {
    %c0_i32 = arith.constant 0 : i32
    %c0_i32_0 = arith.constant 0 : i32
    %c0_i32_1 = arith.constant 0 : i32
    %c0_i32_2 = arith.constant 0 : i32
    return %c0_i32, %c0_i32_0, %c0_i32_1 : i32, i32, i32
  }
  func.func @transform_2(%arg0: i32, %arg1: i32) -> (i32, i32, i32) {
    %c0_i32 = arith.constant 0 : i32
    %c0_i32_0 = arith.constant 0 : i32
    %c0_i32_1 = arith.constant 0 : i32
    %c0_i32_2 = arith.constant 0 : i32
    return %c0_i32, %c0_i32_0, %c0_i32_1 : i32, i32, i32
  }
  func.func @transform_3(%arg0: i32, %arg1: i32) -> (i32, i32, i32) {
    %c0_i32 = arith.constant 0 : i32
    %c0_i32_0 = arith.constant 0 : i32
    %c0_i32_1 = arith.constant 0 : i32
    %c0_i32_2 = arith.constant 0 : i32
    return %c0_i32, %c0_i32_0, %c0_i32_1 : i32, i32, i32
  }
  func.func @transform_4(%arg0: i32, %arg1: i32) -> (i32, i32) {
    %c0_i32 = arith.constant 0 : i32
    %c0_i32_0 = arith.constant 0 : i32
    %c0_i32_1 = arith.constant 0 : i32
    return %c0_i32, %c0_i32_0 : i32, i32
  }
  func.func @transform_5(%arg0: i32, %arg1: i32) -> (i32, i32) {
    %c0_i32 = arith.constant 0 : i32
    %c0_i32_0 = arith.constant 0 : i32
    %c0_i32_1 = arith.constant 0 : i32
    return %c0_i32, %c0_i32_0 : i32, i32
  }
  func.func @transform_6(%arg0: i32, %arg1: i32) -> (i32, i32) {
    %c0_i32 = arith.constant 0 : i32
    %c0_i32_0 = arith.constant 0 : i32
    %c0_i32_1 = arith.constant 0 : i32
    return %c0_i32, %c0_i32_0 : i32, i32
  }
  func.func @transform_7(%arg0: i32, %arg1: i32) -> (i32, i32, i32) {
    %c0_i32 = arith.constant 0 : i32
    %c0_i32_0 = arith.constant 0 : i32
    return %arg0, %c0_i32, %arg1 : i32, i32, i32
  }
}

</mosaic_0001>

<llo_original>
// kernel: cnn_block_forward.1
$region0: #{cnn_block_forward.1}
  #allocation0 [shape = 'u32[]', space=smem, size = 0x4, offset = 0x4, fixed_abs, tag = 'smem constant byte address 0x4 - core index']
  #allocation1 [shape = 'u32[144,128]{1,0:T(1,128)}', space=vmem, size = 0x12000, scoped, tag = 'internal scratch']
  #allocation2 [shape = 'bf16[32,138]{1,0:T(16,128)(2,1)}', space=vmem, size = 0x4000, scoped, tag = 'scratch operand']
  #allocation3 [shape = 'bf16[32,134]{1,0:T(16,128)(2,1)}', space=vmem, size = 0x4000, scoped, tag = 'scratch operand']
  %s0 = inlined_call_operand.vmem [shape: bf16[2,1,8,140], index: 0, kind: input, shape index: {}]
  %s1 = inlined_call_operand.vmem [shape: bf16[3,32,8], index: 1, kind: input, shape index: {}]
  %s2 = inlined_call_operand.vmem [shape: bf16[5,32,32], index: 2, kind: input, shape index: {}]
  %s3 = inlined_call_operand.vmem [shape: bf16[7,64,32], index: 3, kind: input, shape index: {}]
  %s4 = inlined_call_operand.vmem [shape: f32[32,1], index: 4, kind: input, shape index: {}]
  %s5 = inlined_call_operand.vmem [shape: f32[32,1], index: 5, kind: input, shape index: {}]
  %s6 = inlined_call_operand.vmem [shape: f32[64,1], index: 6, kind: input, shape index: {}]
  %s7 = inlined_call_operand.vmem [shape: f32[2,64,128], index: 7, kind: output, shape index: {}]
  %s8 = sld [smem:[#allocation0]]
  $region69: #{cnn_block_forward.1} parent=0
    _
  %s10 = ssub.s32 1, %s8
  %s11 = scalar_select 0, %s10, %s8
  loop: start=0, step=1, limit=4
  $region2: #{cnn_block_forward.1} parent=0 // loop_pre_header
    _
  $region3: #{cnn_block_forward.1} parent=0 // loop_header
    %s13 = sphi 0, %s17
    %p14 = scmp.ge.s32.totalorder %s13, 4
    %s20 = sphi 0, %s32
    %s21 = sphi 0, %s28
    %s22 = sphi 0, %s20
    %s23 = sphi 0, %s21
    %s24 = sphi 0, %s22
    %s25 = sphi 0, %s23
    %s37 = sphi 0, %s39
    %s40 = sphi 0, %s37
    %s41 = sphi 0, %s40
    %s57 = sphi 0, %s41
    %s61 = sphi 0, %s61
    %s63 = sphi 0, %s61
    %s64 = sphi 0, %s63
    %s78 = sphi 0, %s64
    %s82 = sphi 0, %s82
    %s84 = sphi 0, %s82
    %s85 = sphi 0, %s84
    %s99 = sphi 0, %s85
    %s103 = sphi 0, %s103
    %s105 = sphi 0, %s103
    %s106 = sphi 0, %s105
    %s120 = sphi 0, %s106
    %s124 = sphi 0, %s124
    %s126 = sphi 0, %s124
    %s127 = sphi 0, %s126
    %s141 = sphi 0, %s127
    %s145 = sphi 0, %s145
    %s147 = sphi 0, %s145
    %s148 = sphi 0, %s147
    %s162 = sphi 0, %s148
    %s166 = sphi 0, %s166
    %s168 = sphi 0, %s166
    %s169 = sphi 0, %s168
    %s183 = sphi 0, %s169
    %s191 = sphi 0, %s193
    %s194 = sphi 0, %s191
    %s195 = sphi 0, %s194
    %s211 = sphi 0, %s195
  $region4: #{cnn_block_forward.1} parent=0 // loop_header_branch
    %16 = sbr.rel (%p14) target = $region8
  $region5: #{cnn_block_forward.1} parent=0 // loop_body
    %s18 = ssub.s32 %s13, 1
    %s19 = ssub.s32 %s13, 2
    %s26 = sadd.s32 1, %s21
    %p27 = scmp.ge.s32.totalorder %s26, 1
    %s28 = scalar_select %p27, 0, %s26
    %s29 = sadd.s32 1, %s20
    %s30 = scalar_select %p27, %s29, %s20
    %p31 = scmp.ge.s32.totalorder %s30, 2
    %s32 = scalar_select %p31, 0, %s30
    %s33 = ssub.s32 %s20, %s32
    %s34 = ssub.s32 %s21, %s28
    %s35 = sor.u32 %s33, %s34
    %p36 = scmp.eq.s32.totalorder %s35, 0
    %s38 = sadd.s32 %s37, 1
    %s39 = scalar_select %p36, %s37, %s38
    %p42 = pneg %p36
    %p43 = scmp.eq.s32.totalorder %s13, 1
    %p44 = por %p42, %p43
    %p45 = scmp.ne.s32.totalorder %s37, %s40
    %p46 = scmp.eq.s32.totalorder %s13, 0
    %p47 = por %p45, %p46
    %p48 = scmp.ne.s32.totalorder %s37, %s40
    %p49 = scmp.eq.s32.totalorder %s18, 1
    %p50 = por %p48, %p49
    %p51 = scmp.ne.s32.totalorder %s40, %s41
    %p52 = scmp.eq.s32.totalorder %s18, 0
    %p53 = por %p51, %p52
    %p54 = scmp.ne.s32.totalorder %s40, %s41
    %p55 = scmp.eq.s32.totalorder %s19, 1
    %p56 = por %p54, %p55
    %p58 = scmp.ne.s32.totalorder %s41, %s57
    %p59 = scmp.eq.s32.totalorder %s19, 0
    %p60 = por %p58, %p59
    %s62 = sadd.s32 %s61, 1
    %p65 = scmp.eq.s32.totalorder %s13, 1
    %p66 = scmp.ne.s32.totalorder %s61, %s63
    %p67 = scmp.eq.s32.totalorder %s13, 0
    %p68 = por %p66, %p67
    %p69 = scmp.ne.s32.totalorder %s61, %s63
    %p70 = scmp.eq.s32.totalorder %s18, 1
    %p71 = por %p69, %p70
    %p72 = scmp.ne.s32.totalorder %s63, %s64
    %p73 = scmp.eq.s32.totalorder %s18, 0
    %p74 = por %p72, %p73
    %p75 = scmp.ne.s32.totalorder %s63, %s64
    %p76 = scmp.eq.s32.totalorder %s19, 1
    %p77 = por %p75, %p76
    %p79 = scmp.ne.s32.totalorder %s64, %s78
    %p80 = scmp.eq.s32.totalorder %s19, 0
    %p81 = por %p79, %p80
    %s83 = sadd.s32 %s82, 1
    %p86 = scmp.eq.s32.totalorder %s13, 1
    %p87 = scmp.ne.s32.totalorder %s82, %s84
    %p88 = scmp.eq.s32.totalorder %s13, 0
    %p89 = por %p87, %p88
    %p90 = scmp.ne.s32.totalorder %s82, %s84
    %p91 = scmp.eq.s32.totalorder %s18, 1
    %p92 = por %p90, %p91
    %p93 = scmp.ne.s32.totalorder %s84, %s85
    %p94 = scmp.eq.s32.totalorder %s18, 0
    %p95 = por %p93, %p94
    %p96 = scmp.ne.s32.totalorder %s84, %s85
    %p97 = scmp.eq.s32.totalorder %s19, 1
    %p98 = por %p96, %p97
    %p100 = scmp.ne.s32.totalorder %s85, %s99
    %p101 = scmp.eq.s32.totalorder %s19, 0
    %p102 = por %p100, %p101
    %s104 = sadd.s32 %s103, 1
    %p107 = scmp.eq.s32.totalorder %s13, 1
    %p108 = scmp.ne.s32.totalorder %s103, %s105
    %p109 = scmp.eq.s32.totalorder %s13, 0
    %p110 = por %p108, %p109
    %p111 = scmp.ne.s32.totalorder %s103, %s105
    %p112 = scmp.eq.s32.totalorder %s18, 1
    %p113 = por %p111, %p112
    %p114 = scmp.ne.s32.totalorder %s105, %s106
    %p115 = scmp.eq.s32.totalorder %s18, 0
    %p116 = por %p114, %p115
    %p117 = scmp.ne.s32.totalorder %s105, %s106
    %p118 = scmp.eq.s32.totalorder %s19, 1
    %p119 = por %p117, %p118
    %p121 = scmp.ne.s32.totalorder %s106, %s120
    %p122 = scmp.eq.s32.totalorder %s19, 0
    %p123 = por %p121, %p122
    %s125 = sadd.s32 %s124, 1
    %p128 = scmp.eq.s32.totalorder %s13, 1
    %p129 = scmp.ne.s32.totalorder %s124, %s126
    %p130 = scmp.eq.s32.totalorder %s13, 0
    %p131 = por %p129, %p130
    %p132 = scmp.ne.s32.totalorder %s124, %s126
    %p133 = scmp.eq.s32.totalorder %s18, 1
    %p134 = por %p132, %p133
    %p135 = scmp.ne.s32.totalorder %s126, %s127
    %p136 = scmp.eq.s32.totalorder %s18, 0
    %p137 = por %p135, %p136
    %p138 = scmp.ne.s32.totalorder %s126, %s127
    %p139 = scmp.eq.s32.totalorder %s19, 1
    %p140 = por %p138, %p139
    %p142 = scmp.ne.s32.totalorder %s127, %s141
    %p143 = scmp.eq.s32.totalorder %s19, 0
    %p144 = por %p142, %p143
    %s146 = sadd.s32 %s145, 1
    %p149 = scmp.eq.s32.totalorder %s13, 1
    %p150 = scmp.ne.s32.totalorder %s145, %s147
    %p151 = scmp.eq.s32.totalorder %s13, 0
    %p152 = por %p150, %p151
    %p153 = scmp.ne.s32.totalorder %s145, %s147
    %p154 = scmp.eq.s32.totalorder %s18, 1
    %p155 = por %p153, %p154
    %p156 = scmp.ne.s32.totalorder %s147, %s148
    %p157 = scmp.eq.s32.totalorder %s18, 0
    %p158 = por %p156, %p157
    %p159 = scmp.ne.s32.totalorder %s147, %s148
    %p160 = scmp.eq.s32.totalorder %s19, 1
    %p161 = por %p159, %p160
    %p163 = scmp.ne.s32.totalorder %s148, %s162
    %p164 = scmp.eq.s32.totalorder %s19, 0
    %p165 = por %p163, %p164
    %s167 = sadd.s32 %s166, 1
    %p170 = scmp.eq.s32.totalorder %s13, 1
    %p171 = scmp.ne.s32.totalorder %s166, %s168
    %p172 = scmp.eq.s32.totalorder %s13, 0
    %p173 = por %p171, %p172
    %p174 = scmp.ne.s32.totalorder %s166, %s168
    %p175 = scmp.eq.s32.totalorder %s18, 1
    %p176 = por %p174, %p175
    %p177 = scmp.ne.s32.totalorder %s168, %s169
    %p178 = scmp.eq.s32.totalorder %s18, 0
    %p179 = por %p177, %p178
    %p180 = scmp.ne.s32.totalorder %s168, %s169
    %p181 = scmp.eq.s32.totalorder %s19, 1
    %p182 = por %p180, %p181
    %p184 = scmp.ne.s32.totalorder %s169, %s183
    %p185 = scmp.eq.s32.totalorder %s19, 0
    %p186 = por %p184, %p185
    %s187 = ssub.s32 %s20, %s32
    %s188 = ssub.s32 %s21, %s28
    %s189 = sor.u32 %s187, %s188
    %p190 = scmp.eq.s32.totalorder %s189, 0
    %s192 = sadd.s32 %s191, 1
    %s193 = scalar_select %p190, %s191, %s192
    %p196 = pneg %p190
    %p197 = scmp.eq.s32.totalorder %s13, 1
    %p198 = por %p196, %p197
    %p199 = scmp.ne.s32.totalorder %s191, %s194
    %p200 = scmp.eq.s32.totalorder %s13, 0
    %p201 = por %p199, %p200
    %p202 = scmp.ne.s32.totalorder %s191, %s194
    %p203 = scmp.eq.s32.totalorder %s18, 1
    %p204 = por %p202, %p203
    %p205 = scmp.ne.s32.totalorder %s194, %s195
    %p206 = scmp.eq.s32.totalorder %s18, 0
    %p207 = por %p205, %p206
    %p208 = scmp.ne.s32.totalorder %s194, %s195
    %p209 = scmp.eq.s32.totalorder %s19, 1
    %p210 = por %p208, %p209
    %p212 = scmp.ne.s32.totalorder %s195, %s211
    %p213 = scmp.eq.s32.totalorder %s19, 0
    %p214 = por %p212, %p213
    %p215 = scmp.le.s32.totalorder 1, %s13
    %p216 = scmp.lt.s32.totalorder %s13, 3
    %p217 = pnand %p215, %p216
    %p218 = pneg %p217
    // Predicated region
    $region9: #{cnn_block_forward.1} parent=5 // pred_check
      _
    $region10: #{cnn_block_forward.1} parent=5 // pred_check_branch
      %220 = sbr.rel (%p217) target = $region12
    $region11: #{cnn_block_forward.1} parent=5 // pred_region
      %s221 = ssub.s32 %s13, 1
      // Predicated region
      $region13: #{cnn_block_forward.1} parent=11 // pred_check
        %p222 = pneg %p74
      $region14: #{cnn_block_forward.1} parent=11 // pred_check_branch
        %224 = sbr.rel (%p222) target = $region16
      $region15: #{cnn_block_forward.1} parent=11 // pred_region
        _
      $region16: #{cnn_block_forward.1} parent=11 // pred_fallthru
        _
      // Predicated region
      $region17: #{cnn_block_forward.1} parent=11 // pred_check
        %p225 = pneg %p95
      $region18: #{cnn_block_forward.1} parent=11 // pred_check_branch
        %227 = sbr.rel (%p225) target = $region20
      $region19: #{cnn_block_forward.1} parent=11 // pred_region
        _
      $region20: #{cnn_block_forward.1} parent=11 // pred_fallthru
        _
      // Predicated region
      $region21: #{cnn_block_forward.1} parent=11 // pred_check
        %p228 = pneg %p116
      $region22: #{cnn_block_forward.1} parent=11 // pred_check_branch
        %230 = sbr.rel (%p228) target = $region24
      $region23: #{cnn_block_forward.1} parent=11 // pred_region
        _
      $region24: #{cnn_block_forward.1} parent=11 // pred_fallthru
        _
      // Predicated region
      $region25: #{cnn_block_forward.1} parent=11 // pred_check
        %p231 = pneg %p137
      $region26: #{cnn_block_forward.1} parent=11 // pred_check_branch
        %233 = sbr.rel (%p231) target = $region28
      $region27: #{cnn_block_forward.1} parent=11 // pred_region
        _
      $region28: #{cnn_block_forward.1} parent=11 // pred_fallthru
        _
      // Predicated region
      $region29: #{cnn_block_forward.1} parent=11 // pred_check
        %p234 = pneg %p158
      $region30: #{cnn_block_forward.1} parent=11 // pred_check_branch
        %236 = sbr.rel (%p234) target = $region32
      $region31: #{cnn_block_forward.1} parent=11 // pred_region
        _
      $region32: #{cnn_block_forward.1} parent=11 // pred_fallthru
        _
      // Predicated region
      $region33: #{cnn_block_forward.1} parent=11 // pred_check
        %p237 = pneg %p179
      $region34: #{cnn_block_forward.1} parent=11 // pred_check_branch
        %239 = sbr.rel (%p237) target = $region36
      $region35: #{cnn_block_forward.1} parent=11 // pred_region
        _
      $region36: #{cnn_block_forward.1} parent=11 // pred_fallthru
        _
    $region12: #{cnn_block_forward.1} parent=5 // pred_fallthru
      _
    %p240 = scmp.lt.s32.totalorder %s13, 2
    // Predicated region
    $region37: #{cnn_block_forward.1} parent=5 // pred_check
      %p241 = pneg %p240
    $region38: #{cnn_block_forward.1} parent=5 // pred_check_branch
      %243 = sbr.rel (%p241) target = $region40
    $region39: #{cnn_block_forward.1} parent=5 // pred_region
      // Predicated region
      $region41: #{cnn_block_forward.1} parent=39 // pred_check
        %p244 = pneg %p47
      $region42: #{cnn_block_forward.1} parent=39 // pred_check_branch
        %246 = sbr.rel (%p244) target = $region44
      $region43: #{cnn_block_forward.1} parent=39 // pred_region
        %p247 = scmp.lt.s32.totalorder %s20, 1
        %s248 = scalar_select %p247, %s20, 1
        %p249 = scmp.lt.s32.totalorder %s21, 0
        %s250 = scalar_select %p249, %s21, 0
        %s251 = smul.addr %s250, 2
        %s252 = smul.addr %s248, 2
        %s253 = sadd.s32 %s251, %s252
        %s254 = smul.addr %s253, 4
        %s255 = scalar_lea.vmem %s0, %s254
      $region44: #{cnn_block_forward.1} parent=39 // pred_fallthru
        _
    $region40: #{cnn_block_forward.1} parent=5 // pred_fallthru
      _
    %p256 = scmp.le.s32.totalorder 1, %s13
    %p257 = scmp.lt.s32.totalorder %s13, 3
    %p258 = pnand %p256, %p257
    %p259 = pneg %p258
    // Predicated region
    $region45: #{cnn_block_forward.1} parent=5 // pred_check
      _
    $region46: #{cnn_block_forward.1} parent=5 // pred_check_branch
      %261 = sbr.rel (%p258) target = $region48
    $region47: #{cnn_block_forward.1} parent=5 // pred_region
      %s262 = ssub.s32 %s13, 1
      %p263 = scmp.lt.s32.totalorder %s22, 1
      %s264 = scalar_select %p263, %s22, 1
      %p265 = scmp.lt.s32.totalorder %s23, 0
      %s266 = scalar_select %p265, %s23, 0
      %s267 = smul.addr %s266, 2
      %s268 = smul.addr %s264, 2
      %s269 = sadd.s32 %s267, %s268
      %s270 = smul.addr %s269, 4
      %s271 = scalar_lea.vmem %s0, %s270
      %p272 = pneg %p53
      %p273 = pneg %p50
      %p274 = pneg %p74
      %p275 = pneg %p71
      %p276 = pneg %p95
      %p277 = pneg %p92
      %p278 = pneg %p116
      %p279 = pneg %p113
      %p280 = pneg %p137
      %p281 = pneg %p134
      %p282 = pneg %p158
      %p283 = pneg %p155
      %p284 = pneg %p179
      %p285 = pneg %p176
      %p286 = pneg %p207
      %p287 = pneg %p204
      %p288 = scmp.lt.s32.totalorder %s22, 1
      %s289 = scalar_select %p288, %s22, 1
      %p290 = scmp.lt.s32.totalorder %s23, 0
      %s291 = scalar_select %p290, %s23, 0
      %s292 = smul.addr %s289, 8
      %s293 = sadd.s32 %s291, %s292
      %s294 = smul.addr %s293, 8
      %s295 = scalar_lea.vmem %s7, %s294
      %p296 = scmp.lt.s32.totalorder %s22, 1
      %s297 = scalar_select %p296, %s22, 1
      %p298 = scmp.lt.s32.totalorder %s23, 0
      %s299 = scalar_select %p298, %s23, 0
      %s300 = smul.addr %s299, 2
      %s301 = smul.addr %s297, 2
      %s302 = sadd.s32 %s300, %s301
      %s303 = smul.addr %s302, 4
      %s304 = scalar_lea.vmem %s0, %s303
      %p305 = scmp.lt.s32.totalorder %s22, 1
      %s306 = scalar_select %p305, %s22, 1
      %p307 = scmp.lt.s32.totalorder %s23, 0
      %s308 = scalar_select %p307, %s23, 0
      %s309 = smul.addr %s306, 8
      %s310 = sadd.s32 %s308, %s309
      %s311 = smul.addr %s310, 8
      %s312 = scalar_lea.vmem %s7, %s311
      %s316 = smul.u32 %s23, 128
      %v317 = vld [vmem:[%s1] sm:$0xf]
      %v318 = vld [vmem:[%s1 + $0x4] sm:$0xf]
      %v319 = vld [vmem:[%s1 + $0x8] sm:$0xf]
      %v320 = vld [vmem:[%s1 + $0xc] sm:$0xf]
      %v321 = vld [vmem:[%s304] sm:$0xff]
      %s322 = scalar_lea.vmem %s1, 16
      %v323 = vld [vmem:[%s322] sm:$0xf]
      %v324 = vld [vmem:[%s322 + $0x4] sm:$0xf]
      %v325 = vld [vmem:[%s322 + $0x8] sm:$0xf]
      %v326 = vld [vmem:[%s322 + $0xc] sm:$0xf]
      %v331 = vunpack.c.l.b16 %v323
      %v332 = vunpack.c.l.b16 %v324
      %v333 = vunpack.c.l.b16 %v325
      %v334 = vunpack.c.l.b16 %v326
      %v335 = vpack.c.b16 %v332, %v331
      %v336 = vpack.c.b16 %v334, %v333
      %v338 = vunpack.c.l.b16 %v321
      %v339 = vunpack.c.h.b16 %v321
      %v340 = vpack.c.b16 %v338, %v338
      %v341 = vpack.c.b16 %v339, %v339
      %342 = vrot.lane.b32.xlu0 %v340, 127
      %v343 = vpop.permute.xlu0 %342
      %344 = vrot.lane.b32.xlu0 %v341, 127
      %v345 = vpop.permute.xlu0 %344
      %vm346 = vcmask 1039360
      %v347 = vsel %vm346, %v343, %v345
      %vm348 = vcmask 64512
      %v350 = vsel %vm348, %v335, 0
      %v353 = vsel %vm348, %v336, 0
      %vm355 = vcmask 1043456
      %v357 = vsel %vm355, %v347, 0
      %v360 = vsel %vm355, %v345, 0
      %362 = vmatprep.subr.bf16.mxu0 %v360
      %363 = vmatpush1.bf16.msra.mxu0 %v357
      %364 = vmatprep.subr.bf16.mxu0 0
      %365 = vmatpush1.bf16.msra.mxu0 0
      %366 = vmatprep.subr.bf16.mxu0 0
      %367 = vmatpush1.bf16.msra.mxu0 0
      %368 = vmatprep.subr.bf16.mxu0 0
      %369 = vmatpush1.bf16.msra.mxu0 0
      %370 = vmatprep.subr.bf16.mxu0 0
      %371 = vmatpush1.bf16.msra.mxu0 0
      %372 = vmatprep.subr.bf16.mxu0 0
      %373 = vmatpush1.bf16.msra.mxu0 0
      %374 = vmatprep.subr.bf16.mxu0 0
      %375 = vmatpush1.bf16.msra.mxu0 0
      %376 = vmatprep.subr.bf16.mxu0 0
      %377 = vmatpush1.bf16.msra.mxu0 0
      %378 = vmatprep.subr.bf16.mxu0 0
      %379 = vmatpush1.bf16.msra.mxu0 0
      %380 = vmatprep.subr.bf16.mxu0 0
      %381 = vmatpush1.bf16.msra.mxu0 0
      %382 = vmatprep.subr.bf16.mxu0 0
      %383 = vmatpush1.bf16.msra.mxu0 0
      %384 = vmatprep.subr.bf16.mxu0 0
      %385 = vmatpush1.bf16.msra.mxu0 0
      %386 = vmatprep.subr.bf16.mxu0 0
      %387 = vmatpush1.bf16.msra.mxu0 0
      %388 = vmatprep.subr.bf16.mxu0 0
      %389 = vmatpush1.bf16.msra.mxu0 0
      %390 = vmatprep.subr.bf16.mxu0 0
      %391 = vmatpush1.bf16.msra.mxu0 0
      %392 = vmatprep.subr.bf16.mxu0 0
      %393 = vmatpush1.bf16.msra.mxu0 0
      %394 = vmatprep.mubr.bf16.mxu0 0
      %395 = vmatmul.mubr.bf16.gmra.mrb[0].mxu0 %v350
      %v396 = vpop.f32.mrb[0].mxu0
      %v397 = vadd.f32 0.0, %v396
      %v398 = vpop.f32.mrb[0].mxu0
      %v399 = vadd.f32 0.0, %v398
      %v400 = vpop.f32.mrb[0].mxu0
      %v401 = vadd.f32 0.0, %v400
      %v402 = vpop.f32.mrb[0].mxu0
      %v403 = vadd.f32 0.0, %v402
      %404 = vmatprep.mubr.bf16.mxu0 0
      %405 = vmatmul.mubr.bf16.gmra.mrb[0].mxu0 %v353
      %v406 = vpop.f32.mrb[0].mxu0
      %v407 = vadd.f32 0.0, %v406
      %v408 = vpop.f32.mrb[0].mxu0
      %v409 = vadd.f32 0.0, %v408
      %v410 = vpop.f32.mrb[0].mxu0
      %v411 = vadd.f32 0.0, %v410
      %v412 = vpop.f32.mrb[0].mxu0
      %v413 = vadd.f32 0.0, %v412
      %414 = vdwg.mxu0
      %v419 = vunpack.c.l.b16 %v317
      %v420 = vunpack.c.l.b16 %v318
      %v421 = vunpack.c.l.b16 %v319
      %v422 = vunpack.c.l.b16 %v320
      %v423 = vpack.c.b16 %v420, %v419
      %v424 = vpack.c.b16 %v422, %v421
      %v426 = vsel %vm348, %v423, 0
      %v429 = vsel %vm348, %v424, 0
      %v432 = vsel %vm355, %v340, 0
      %v435 = vsel %vm355, %v341, 0
      %437 = vmatprep.subr.bf16.mxu0 %v435
      %438 = vmatpush1.bf16.msra.mxu0 %v432
      %439 = vmatprep.subr.bf16.mxu0 0
      %440 = vmatpush1.bf16.msra.mxu0 0
      %441 = vmatprep.subr.bf16.mxu0 0
      %442 = vmatpush1.bf16.msra.mxu0 0
      %443 = vmatprep.subr.bf16.mxu0 0
      %444 = vmatpush1.bf16.msra.mxu0 0
      %445 = vmatprep.subr.bf16.mxu0 0
      %446 = vmatpush1.bf16.msra.mxu0 0
      %447 = vmatprep.subr.bf16.mxu0 0
      %448 = vmatpush1.bf16.msra.mxu0 0
      %449 = vmatprep.subr.bf16.mxu0 0
      %450 = vmatpush1.bf16.msra.mxu0 0
      %451 = vmatprep.subr.bf16.mxu0 0
      %452 = vmatpush1.bf16.msra.mxu0 0
      %453 = vmatprep.subr.bf16.mxu0 0
      %454 = vmatpush1.bf16.msra.mxu0 0
      %455 = vmatprep.subr.bf16.mxu0 0
      %456 = vmatpush1.bf16.msra.mxu0 0
      %457 = vmatprep.subr.bf16.mxu0 0
      %458 = vmatpush1.bf16.msra.mxu0 0
      %459 = vmatprep.subr.bf16.mxu0 0
      %460 = vmatpush1.bf16.msra.mxu0 0
      %461 = vmatprep.subr.bf16.mxu0 0
      %462 = vmatpush1.bf16.msra.mxu0 0
      %463 = vmatprep.subr.bf16.mxu0 0
      %464 = vmatpush1.bf16.msra.mxu0 0
      %465 = vmatprep.subr.bf16.mxu0 0
      %466 = vmatpush1.bf16.msra.mxu0 0
      %467 = vmatprep.subr.bf16.mxu0 0
      %468 = vmatpush1.bf16.msra.mxu0 0
      %469 = vmatprep.mubr.bf16.mxu0 0
      %470 = vmatmul.mubr.bf16.gmra.mrb[0].mxu0 %v426
      %v471 = vpop.f32.mrb[0].mxu0
      %v472 = vadd.f32 %v397, %v471
      %v473 = vpop.f32.mrb[0].mxu0
      %v474 = vadd.f32 %v399, %v473
      %v475 = vpop.f32.mrb[0].mxu0
      %v476 = vadd.f32 %v401, %v475
      %v477 = vpop.f32.mrb[0].mxu0
      %v478 = vadd.f32 %v403, %v477
      %479 = vmatprep.mubr.bf16.mxu0 0
      %480 = vmatmul.mubr.bf16.gmra.mrb[0].mxu0 %v429
      %v481 = vpop.f32.mrb[0].mxu0
      %v482 = vadd.f32 %v407, %v481
      %v483 = vpop.f32.mrb[0].mxu0
      %v484 = vadd.f32 %v409, %v483
      %v485 = vpop.f32.mrb[0].mxu0
      %v486 = vadd.f32 %v411, %v485
      %v487 = vpop.f32.mrb[0].mxu0
      %v488 = vadd.f32 %v413, %v487
      %489 = vdwg.mxu0
      %s490 = scalar_lea.vmem %s1, 32
      %v491 = vld [vmem:[%s490] sm:$0xf]
      %v492 = vld [vmem:[%s490 + $0x4] sm:$0xf]
      %v493 = vld [vmem:[%s490 + $0x8] sm:$0xf]
      %v494 = vld [vmem:[%s490 + $0xc] sm:$0xf]
      %v499 = vunpack.c.l.b16 %v491
      %v500 = vunpack.c.l.b16 %v492
      %v501 = vunpack.c.l.b16 %v493
      %v502 = vunpack.c.l.b16 %v494
      %v503 = vpack.c.b16 %v500, %v499
      %v504 = vpack.c.b16 %v502, %v501
      %505 = vrot.lane.b32.xlu0 %v340, 126
      %v506 = vpop.permute.xlu0 %505
      %507 = vrot.lane.b32.xlu0 %v341, 126
      %v508 = vpop.permute.xlu0 %507
      %vm509 = vcmask 1031168
      %v510 = vsel %vm509, %v506, %v508
      %v512 = vsel %vm348, %v503, 0
      %v515 = vsel %vm348, %v504, 0
      %v518 = vsel %vm355, %v510, 0
      %v521 = vsel %vm355, %v508, 0
      %523 = vmatprep.subr.bf16.mxu0 %v521
      %524 = vmatpush1.bf16.msra.mxu0 %v518
      %525 = vmatprep.subr.bf16.mxu0 0
      %526 = vmatpush1.bf16.msra.mxu0 0
      %527 = vmatprep.subr.bf16.mxu0 0
      %528 = vmatpush1.bf16.msra.mxu0 0
      %529 = vmatprep.subr.bf16.mxu0 0
      %530 = vmatpush1.bf16.msra.mxu0 0
      %531 = vmatprep.subr.bf16.mxu0 0
      %532 = vmatpush1.bf16.msra.mxu0 0
      %533 = vmatprep.subr.bf16.mxu0 0
      %534 = vmatpush1.bf16.msra.mxu0 0
      %535 = vmatprep.subr.bf16.mxu0 0
      %536 = vmatpush1.bf16.msra.mxu0 0
      %537 = vmatprep.subr.bf16.mxu0 0
      %538 = vmatpush1.bf16.msra.mxu0 0
      %539 = vmatprep.subr.bf16.mxu0 0
      %540 = vmatpush1.bf16.msra.mxu0 0
      %541 = vmatprep.subr.bf16.mxu0 0
      %542 = vmatpush1.bf16.msra.mxu0 0
      %543 = vmatprep.subr.bf16.mxu0 0
      %544 = vmatpush1.bf16.msra.mxu0 0
      %545 = vmatprep.subr.bf16.mxu0 0
      %546 = vmatpush1.bf16.msra.mxu0 0
      %547 = vmatprep.subr.bf16.mxu0 0
      %548 = vmatpush1.bf16.msra.mxu0 0
      %549 = vmatprep.subr.bf16.mxu0 0
      %550 = vmatpush1.bf16.msra.mxu0 0
      %551 = vmatprep.subr.bf16.mxu0 0
      %552 = vmatpush1.bf16.msra.mxu0 0
      %553 = vmatprep.subr.bf16.mxu0 0
      %554 = vmatpush1.bf16.msra.mxu0 0
      %555 = vmatprep.mubr.bf16.mxu0 0
      %556 = vmatmul.mubr.bf16.gmra.mrb[0].mxu0 %v512
      %v557 = vpop.f32.mrb[0].mxu0
      %v558 = vadd.f32 0.0, %v557
      %v559 = vpop.f32.mrb[0].mxu0
      %v560 = vadd.f32 0.0, %v559
      %v561 = vpop.f32.mrb[0].mxu0
      %v562 = vadd.f32 0.0, %v561
      %v563 = vpop.f32.mrb[0].mxu0
      %v564 = vadd.f32 0.0, %v563
      %565 = vmatprep.mubr.bf16.mxu0 0
      %566 = vmatmul.mubr.bf16.gmra.mrb[0].mxu0 %v515
      %v567 = vpop.f32.mrb[0].mxu0
      %v568 = vadd.f32 0.0, %v567
      %v569 = vpop.f32.mrb[0].mxu0
      %v570 = vadd.f32 0.0, %v569
      %v571 = vpop.f32.mrb[0].mxu0
      %v572 = vadd.f32 0.0, %v571
      %v573 = vpop.f32.mrb[0].mxu0
      %v574 = vadd.f32 0.0, %v573
      %575 = vdwg.mxu0
      %v576 = vadd.f32 %v472, %v558
      %v577 = vadd.f32 %v474, %v560
      %v578 = vadd.f32 %v476, %v562
      %v579 = vadd.f32 %v478, %v564
      %v580 = vadd.f32 %v482, %v568
      %v581 = vadd.f32 %v484, %v570
      %v582 = vadd.f32 %v486, %v572
      %v583 = vadd.f32 %v488, %v574
      %v584 = vld [vmem:[%s4] sm:$0xff]
      %v585 = vld [vmem:[%s4 + $0x8] sm:$0xff]
      %v586 = vld [vmem:[%s4 + $0x10] sm:$0xff]
      %v587 = vld [vmem:[%s4 + $0x18] sm:$0xff]
      %589 = vset.pattern.permute.xlu0 0
      %590 = vperm.xlu0 %589, %v584
      %v591 = vpop.permute.xlu0 %590
      %594 = vset.pattern.permute.xlu0 0
      %595 = vperm.xlu0 %594, %v585
      %v596 = vpop.permute.xlu0 %595
      %599 = vset.pattern.permute.xlu0 0
      %600 = vperm.xlu0 %599, %v586
      %v601 = vpop.permute.xlu0 %600
      %604 = vset.pattern.permute.xlu0 0
      %605 = vperm.xlu0 %604, %v587
      %v606 = vpop.permute.xlu0 %605
      %v608 = vadd.f32 %v576, %v591
      %v609 = vadd.f32 %v577, %v591
      %v610 = vadd.f32 %v578, %v596
      %v611 = vadd.f32 %v579, %v596
      %v612 = vadd.f32 %v580, %v601
      %v613 = vadd.f32 %v581, %v601
      %v614 = vadd.f32 %v582, %v606
      %v615 = vadd.f32 %v583, %v606
      %v616 = vmax.f32 %v608, 0.0
      %v617 = vmax.f32 %v609, 0.0
      %v618 = vmax.f32 %v610, 0.0
      %v619 = vmax.f32 %v611, 0.0
      %v620 = vmax.f32 %v612, 0.0
      %v621 = vmax.f32 %v613, 0.0
      %v622 = vmax.f32 %v614, 0.0
      %v623 = vmax.f32 %v615, 0.0
      %v624 = vpack.c.bf16 %v618, %v616
      %v625 = vpack.c.bf16 %v619, %v617
      %v626 = vpack.c.bf16 %v622, %v620
      %v627 = vpack.c.bf16 %v623, %v621
      %628 = vst [vmem:[#allocation2] sm:$0xff] %v624
      %vm629 = vcmask 80896
      %630 = vst.msk [vmem:[#allocation2 + $0x8] sm:$0xff] %vm629, %v625
      %631 = vst [vmem:[#allocation2 + $0x10] sm:$0xff] %v626
      %632 = vst.msk [vmem:[#allocation2 + $0x18] sm:$0xff] %vm629, %v627
      %s633 = ssub.s32 %s316, 5
      %s634 = sadd.s32 %s316, 133
      %p635 = scmp.gt.s32.totalorder %s634, 16
      %p636 = scmp.eq.s32.totalorder %s23, 0
      %p637 = por %p636, %p635
      // Predicated region
      $region49: #{cnn_block_forward.1} parent=47 // pred_check
        %p638 = pneg %p637
      $region50: #{cnn_block_forward.1} parent=47 // pred_check_branch
        %640 = sbr.rel (%p638) target = $region52
      $region51: #{cnn_block_forward.1} parent=47 // pred_region
        %v641 = vlaneseq
        %v642 = vand.u32 %v641, 127
        %v643 = vadd.s32 %v642, 128
        %v644 = vstv %s633
        %v645 = vadd.s32 %v642, %v644
        %v646 = vadd.s32 %v643, %v644
        %vm647 = vcmp.ge.s32.totalorder %v645, 0
        %vm648 = vcmp.ge.s32.totalorder %v646, 0
        %vm649 = vcmp.lt.s32.totalorder %v645, 16
        %vm650 = vcmp.lt.s32.totalorder %v646, 16
        %vm651 = vmand %vm647, %vm649
        %vm652 = vmand %vm648, %vm650
        %v653 = vld [vmem:[#allocation2] sm:$0xff]
        %v654 = vld [vmem:[#allocation2 + $0x8] sm:$0xff]
        %v655 = vld [vmem:[#allocation2 + $0x10] sm:$0xff]
        %v656 = vld [vmem:[#allocation2 + $0x18] sm:$0xff]
        %v657 = vsel %vm651, 1, 0
        %v658 = vsel %vm652, 1, 0
        %vm659 = vcmp.eq.s32.totalorder %v657, 1
        %vm660 = vcmp.eq.s32.totalorder %v658, 1
        %vm661 = vmpackc.low %vm660, %vm659
        %v662 = vsel %vm661, 65537, 0
        %v663 = vlaneseq
        %v664 = vshrl.u32 %v663, 7
        %v665 = vsub.s32 0, %v664
        %v666 = vrot.slane %v662, %v665
        %v667 = vlaneseq
        %v668 = vshrl.u32 %v667, 7
        %v669 = vsub.s32 4, %v668
        %v670 = vrot.slane %v662, %v669
        %vm671 = vcmp.ne.s16.totalorder %v666, 0
        %vm672 = vcmp.ne.s16.totalorder %v670, 0
        %v673 = vsel %vm671, %v653, 0
        %v674 = vsel %vm672, %v654, 0
        %v675 = vsel %vm671, %v655, 0
        %v676 = vsel %vm672, %v656, 0
        %677 = vst [vmem:[#allocation2] sm:$0xff] %v673
        %678 = vst.msk [vmem:[#allocation2 + $0x8] sm:$0xff] %vm629, %v674
        %679 = vst [vmem:[#allocation2 + $0x10] sm:$0xff] %v675
        %680 = vst.msk [vmem:[#allocation2 + $0x18] sm:$0xff] %vm629, %v676
      $region52: #{cnn_block_forward.1} parent=47 // pred_fallthru
        _
      %v681 = vld [vmem:[%s2] sm:$0xf]
      %v682 = vld [vmem:[%s2 + $0x4] sm:$0xf]
      %v683 = vld [vmem:[%s2 + $0x8] sm:$0xf]
      %v684 = vld [vmem:[%s2 + $0xc] sm:$0xf]
      %v685 = vld [vmem:[#allocation2] sm:$0xff]
      %v686 = vld [vmem:[#allocation2 + $0x8] sm:$0xff]
      %v687 = vld [vmem:[#allocation2 + $0x10] sm:$0xff]
      %v688 = vld [vmem:[#allocation2 + $0x18] sm:$0xff]
      %s689 = scalar_lea.vmem %s2, 16
      %v690 = vld [vmem:[%s689] sm:$0xf]
      %v691 = vld [vmem:[%s689 + $0x4] sm:$0xf]
      %v692 = vld [vmem:[%s689 + $0x8] sm:$0xf]
      %v693 = vld [vmem:[%s689 + $0xc] sm:$0xf]
      %v698 = vunpack.c.l.b16 %v690
      %v699 = vunpack.c.l.b16 %v691
      %v700 = vunpack.c.l.b16 %v692
      %v701 = vunpack.c.l.b16 %v693
      %v702 = vpack.c.b16 %v699, %v698
      %v703 = vpack.c.b16 %v701, %v700
      %708 = vrot.lane.b32.xlu0 %v685, 127
      %v709 = vpop.permute.xlu0 %708
      %710 = vrot.lane.b32.xlu0 %v686, 127
      %v711 = vpop.permute.xlu0 %710
      %712 = vrot.lane.b32.xlu0 %v687, 127
      %v713 = vpop.permute.xlu0 %712
      %714 = vrot.lane.b32.xlu0 %v688, 127
      %v715 = vpop.permute.xlu0 %714
      %v716 = vsel %vm346, %v709, %v711
      %v717 = vsel %vm346, %v713, %v715
      %vm722 = vcmask 261120
      %v724 = vsel %vm722, %v702, 0
      %v727 = vsel %vm722, %v703, 0
      %729 = vmatprep.subr.bf16.mxu0 %v711
      %730 = vmatpush1.bf16.msra.mxu0 %v716
      %731 = vmatprep.subr.bf16.mxu0 %v715
      %732 = vmatpush1.bf16.msra.mxu0 %v717
      %733 = vmatprep.subr.bf16.mxu0 0
      %734 = vmatpush1.bf16.msra.mxu0 0
      %735 = vmatprep.subr.bf16.mxu0 0
      %736 = vmatpush1.bf16.msra.mxu0 0
      %737 = vmatprep.subr.bf16.mxu0 0
      %738 = vmatpush1.bf16.msra.mxu0 0
      %739 = vmatprep.subr.bf16.mxu0 0
      %740 = vmatpush1.bf16.msra.mxu0 0
      %741 = vmatprep.subr.bf16.mxu0 0
      %742 = vmatpush1.bf16.msra.mxu0 0
      %743 = vmatprep.subr.bf16.mxu0 0
      %744 = vmatpush1.bf16.msra.mxu0 0
      %745 = vmatprep.subr.bf16.mxu0 0
      %746 = vmatpush1.bf16.msra.mxu0 0
      %747 = vmatprep.subr.bf16.mxu0 0
      %748 = vmatpush1.bf16.msra.mxu0 0
      %749 = vmatprep.subr.bf16.mxu0 0
      %750 = vmatpush1.bf16.msra.mxu0 0
      %751 = vmatprep.subr.bf16.mxu0 0
      %752 = vmatpush1.bf16.msra.mxu0 0
      %753 = vmatprep.subr.bf16.mxu0 0
      %754 = vmatpush1.bf16.msra.mxu0 0
      %755 = vmatprep.subr.bf16.mxu0 0
      %756 = vmatpush1.bf16.msra.mxu0 0
      %757 = vmatprep.subr.bf16.mxu0 0
      %758 = vmatpush1.bf16.msra.mxu0 0
      %759 = vmatprep.subr.bf16.mxu0 0
      %760 = vmatpush1.bf16.msra.mxu0 0
      %761 = vmatprep.mubr.bf16.mxu0 0
      %762 = vmatmul.mubr.bf16.gmra.mrb[0].mxu0 %v724
      %v763 = vpop.f32.mrb[0].mxu0
      %v764 = vadd.f32 0.0, %v763
      %v765 = vpop.f32.mrb[0].mxu0
      %v766 = vadd.f32 0.0, %v765
      %v767 = vpop.f32.mrb[0].mxu0
      %v768 = vadd.f32 0.0, %v767
      %v769 = vpop.f32.mrb[0].mxu0
      %v770 = vadd.f32 0.0, %v769
      %771 = vmatprep.mubr.bf16.mxu0 0
      %772 = vmatmul.mubr.bf16.gmra.mrb[0].mxu0 %v727
      %v773 = vpop.f32.mrb[0].mxu0
      %v774 = vadd.f32 0.0, %v773
      %v775 = vpop.f32.mrb[0].mxu0
      %v776 = vadd.f32 0.0, %v775
      %v777 = vpop.f32.mrb[0].mxu0
      %v778 = vadd.f32 0.0, %v777
      %v779 = vpop.f32.mrb[0].mxu0
      %v780 = vadd.f32 0.0, %v779
      %781 = vdwg.mxu0
      %v786 = vunpack.c.l.b16 %v681
      %v787 = vunpack.c.l.b16 %v682
      %v788 = vunpack.c.l.b16 %v683
      %v789 = vunpack.c.l.b16 %v684
      %v790 = vpack.c.b16 %v787, %v786
      %v791 = vpack.c.b16 %v789, %v788
      %v793 = vsel %vm722, %v790, 0
      %v796 = vsel %vm722, %v791, 0
      %798 = vmatprep.subr.bf16.mxu0 %v686
      %799 = vmatpush1.bf16.msra.mxu0 %v685
      %800 = vmatprep.subr.bf16.mxu0 %v688
      %801 = vmatpush1.bf16.msra.mxu0 %v687
      %802 = vmatprep.subr.bf16.mxu0 0
      %803 = vmatpush1.bf16.msra.mxu0 0
      %804 = vmatprep.subr.bf16.mxu0 0
      %805 = vmatpush1.bf16.msra.mxu0 0
      %806 = vmatprep.subr.bf16.mxu0 0
      %807 = vmatpush1.bf16.msra.mxu0 0
      %808 = vmatprep.subr.bf16.mxu0 0
      %809 = vmatpush1.bf16.msra.mxu0 0
      %810 = vmatprep.subr.bf16.mxu0 0
      %811 = vmatpush1.bf16.msra.mxu0 0
      %812 = vmatprep.subr.bf16.mxu0 0
      %813 = vmatpush1.bf16.msra.mxu0 0
      %814 = vmatprep.subr.bf16.mxu0 0
      %815 = vmatpush1.bf16.msra.mxu0 0
      %816 = vmatprep.subr.bf16.mxu0 0
      %817 = vmatpush1.bf16.msra.mxu0 0
      %818 = vmatprep.subr.bf16.mxu0 0
      %819 = vmatpush1.bf16.msra.mxu0 0
      %820 = vmatprep.subr.bf16.mxu0 0
      %821 = vmatpush1.bf16.msra.mxu0 0
      %822 = vmatprep.subr.bf16.mxu0 0
      %823 = vmatpush1.bf16.msra.mxu0 0
      %824 = vmatprep.subr.bf16.mxu0 0
      %825 = vmatpush1.bf16.msra.mxu0 0
      %826 = vmatprep.subr.bf16.mxu0 0
      %827 = vmatpush1.bf16.msra.mxu0 0
      %828 = vmatprep.subr.bf16.mxu0 0
      %829 = vmatpush1.bf16.msra.mxu0 0
      %830 = vmatprep.mubr.bf16.mxu0 0
      %831 = vmatmul.mubr.bf16.gmra.mrb[0].mxu0 %v793
      %v832 = vpop.f32.mrb[0].mxu0
      %v833 = vadd.f32 %v764, %v832
      %v834 = vpop.f32.mrb[0].mxu0
      %v835 = vadd.f32 %v766, %v834
      %v836 = vpop.f32.mrb[0].mxu0
      %v837 = vadd.f32 %v768, %v836
      %v838 = vpop.f32.mrb[0].mxu0
      %v839 = vadd.f32 %v770, %v838
      %840 = vmatprep.mubr.bf16.mxu0 0
      %841 = vmatmul.mubr.bf16.gmra.mrb[0].mxu0 %v796
      %v842 = vpop.f32.mrb[0].mxu0
      %v843 = vadd.f32 %v774, %v842
      %v844 = vpop.f32.mrb[0].mxu0
      %v845 = vadd.f32 %v776, %v844
      %v846 = vpop.f32.mrb[0].mxu0
      %v847 = vadd.f32 %v778, %v846
      %v848 = vpop.f32.mrb[0].mxu0
      %v849 = vadd.f32 %v780, %v848
      %850 = vdwg.mxu0
      %s851 = scalar_lea.vmem %s2, 32
      %v852 = vld [vmem:[%s851] sm:$0xf]
      %v853 = vld [vmem:[%s851 + $0x4] sm:$0xf]
      %v854 = vld [vmem:[%s851 + $0x8] sm:$0xf]
      %v855 = vld [vmem:[%s851 + $0xc] sm:$0xf]
      %v860 = vunpack.c.l.b16 %v852
      %v861 = vunpack.c.l.b16 %v853
      %v862 = vunpack.c.l.b16 %v854
      %v863 = vunpack.c.l.b16 %v855
      %v864 = vpack.c.b16 %v861, %v860
      %v865 = vpack.c.b16 %v863, %v862
      %866 = vrot.lane.b32.xlu0 %v685, 126
      %v867 = vpop.permute.xlu0 %866
      %868 = vrot.lane.b32.xlu0 %v686, 126
      %v869 = vpop.permute.xlu0 %868
      %870 = vrot.lane.b32.xlu0 %v687, 126
      %v871 = vpop.permute.xlu0 %870
      %872 = vrot.lane.b32.xlu0 %v688, 126
      %v873 = vpop.permute.xlu0 %872
      %v874 = vsel %vm509, %v867, %v869
      %v875 = vsel %vm509, %v871, %v873
      %v881 = vsel %vm722, %v864, 0
      %v884 = vsel %vm722, %v865, 0
      %886 = vmatprep.subr.bf16.mxu0 %v869
      %887 = vmatpush1.bf16.msra.mxu0 %v874
      %888 = vmatprep.subr.bf16.mxu0 %v873
      %889 = vmatpush1.bf16.msra.mxu0 %v875
      %890 = vmatprep.subr.bf16.mxu0 0
      %891 = vmatpush1.bf16.msra.mxu0 0
      %892 = vmatprep.subr.bf16.mxu0 0
      %893 = vmatpush1.bf16.msra.mxu0 0
      %894 = vmatprep.subr.bf16.mxu0 0
      %895 = vmatpush1.bf16.msra.mxu0 0
      %896 = vmatprep.subr.bf16.mxu0 0
      %897 = vmatpush1.bf16.msra.mxu0 0
      %898 = vmatprep.subr.bf16.mxu0 0
      %899 = vmatpush1.bf16.msra.mxu0 0
      %900 = vmatprep.subr.bf16.mxu0 0
      %901 = vmatpush1.bf16.msra.mxu0 0
      %902 = vmatprep.subr.bf16.mxu0 0
      %903 = vmatpush1.bf16.msra.mxu0 0
      %904 = vmatprep.subr.bf16.mxu0 0
      %905 = vmatpush1.bf16.msra.mxu0 0
      %906 = vmatprep.subr.bf16.mxu0 0
      %907 = vmatpush1.bf16.msra.mxu0 0
      %908 = vmatprep.subr.bf16.mxu0 0
      %909 = vmatpush1.bf16.msra.mxu0 0
      %910 = vmatprep.subr.bf16.mxu0 0
      %911 = vmatpush1.bf16.msra.mxu0 0
      %912 = vmatprep.subr.bf16.mxu0 0
      %913 = vmatpush1.bf16.msra.mxu0 0
      %914 = vmatprep.subr.bf16.mxu0 0
      %915 = vmatpush1.bf16.msra.mxu0 0
      %916 = vmatprep.subr.bf16.mxu0 0
      %917 = vmatpush1.bf16.msra.mxu0 0
      %918 = vmatprep.mubr.bf16.mxu0 0
      %919 = vmatmul.mubr.bf16.gmra.mrb[0].mxu0 %v881
      %v920 = vpop.f32.mrb[0].mxu0
      %v921 = vadd.f32 0.0, %v920
      %v922 = vpop.f32.mrb[0].mxu0
      %v923 = vadd.f32 0.0, %v922
      %v924 = vpop.f32.mrb[0].mxu0
      %v925 = vadd.f32 0.0, %v924
      %v926 = vpop.f32.mrb[0].mxu0
      %v927 = vadd.f32 0.0, %v926
      %928 = vmatprep.mubr.bf16.mxu0 0
      %929 = vmatmul.mubr.bf16.gmra.mrb[0].mxu0 %v884
      %v930 = vpop.f32.mrb[0].mxu0
      %v931 = vadd.f32 0.0, %v930
      %v932 = vpop.f32.mrb[0].mxu0
      %v933 = vadd.f32 0.0, %v932
      %v934 = vpop.f32.mrb[0].mxu0
      %v935 = vadd.f32 0.0, %v934
      %v936 = vpop.f32.mrb[0].mxu0
      %v937 = vadd.f32 0.0, %v936
      %938 = vdwg.mxu0
      %v939 = vadd.f32 %v833, %v921
      %v940 = vadd.f32 %v835, %v923
      %v941 = vadd.f32 %v837, %v925
      %v942 = vadd.f32 %v839, %v927
      %v943 = vadd.f32 %v843, %v931
      %v944 = vadd.f32 %v845, %v933
      %v945 = vadd.f32 %v847, %v935
      %v946 = vadd.f32 %v849, %v937
      %s947 = scalar_lea.vmem %s2, 48
      %v948 = vld [vmem:[%s947] sm:$0xf]
      %v949 = vld [vmem:[%s947 + $0x4] sm:$0xf]
      %v950 = vld [vmem:[%s947 + $0x8] sm:$0xf]
      %v951 = vld [vmem:[%s947 + $0xc] sm:$0xf]
      %v956 = vunpack.c.l.b16 %v948
      %v957 = vunpack.c.l.b16 %v949
      %v958 = vunpack.c.l.b16 %v950
      %v959 = vunpack.c.l.b16 %v951
      %v960 = vpack.c.b16 %v957, %v956
      %v961 = vpack.c.b16 %v959, %v958
      %962 = vrot.lane.b32.xlu0 %v685, 125
      %v963 = vpop.permute.xlu0 %962
      %964 = vrot.lane.b32.xlu0 %v686, 125
      %v965 = vpop.permute.xlu0 %964
      %966 = vrot.lane.b32.xlu0 %v687, 125
      %v967 = vpop.permute.xlu0 %966
      %968 = vrot.lane.b32.xlu0 %v688, 125
      %v969 = vpop.permute.xlu0 %968
      %vm970 = vcmask 1022976
      %v971 = vsel %vm970, %v963, %v965
      %v972 = vsel %vm970, %v967, %v969
      %v978 = vsel %vm722, %v960, 0
      %v981 = vsel %vm722, %v961, 0
      %983 = vmatprep.subr.bf16.mxu0 %v965
      %984 = vmatpush1.bf16.msra.mxu0 %v971
      %985 = vmatprep.subr.bf16.mxu0 %v969
      %986 = vmatpush1.bf16.msra.mxu0 %v972
      %987 = vmatprep.subr.bf16.mxu0 0
      %988 = vmatpush1.bf16.msra.mxu0 0
      %989 = vmatprep.subr.bf16.mxu0 0
      %990 = vmatpush1.bf16.msra.mxu0 0
      %991 = vmatprep.subr.bf16.mxu0 0
      %992 = vmatpush1.bf16.msra.mxu0 0
      %993 = vmatprep.subr.bf16.mxu0 0
      %994 = vmatpush1.bf16.msra.mxu0 0
      %995 = vmatprep.subr.bf16.mxu0 0
      %996 = vmatpush1.bf16.msra.mxu0 0
      %997 = vmatprep.subr.bf16.mxu0 0
      %998 = vmatpush1.bf16.msra.mxu0 0
      %999 = vmatprep.subr.bf16.mxu0 0
      %1000 = vmatpush1.bf16.msra.mxu0 0
      %1001 = vmatprep.subr.bf16.mxu0 0
      %1002 = vmatpush1.bf16.msra.mxu0 0
      %1003 = vmatprep.subr.bf16.mxu0 0
      %1004 = vmatpush1.bf16.msra.mxu0 0
      %1005 = vmatprep.subr.bf16.mxu0 0
      %1006 = vmatpush1.bf16.msra.mxu0 0
      %1007 = vmatprep.subr.bf16.mxu0 0
      %1008 = vmatpush1.bf16.msra.mxu0 0
      %1009 = vmatprep.subr.bf16.mxu0 0
      %1010 = vmatpush1.bf16.msra.mxu0 0
      %1011 = vmatprep.subr.bf16.mxu0 0
      %1012 = vmatpush1.bf16.msra.mxu0 0
      %1013 = vmatprep.subr.bf16.mxu0 0
      %1014 = vmatpush1.bf16.msra.mxu0 0
      %1015 = vmatprep.mubr.bf16.mxu0 0
      %1016 = vmatmul.mubr.bf16.gmra.mrb[0].mxu0 %v978
      %v1017 = vpop.f32.mrb[0].mxu0
      %v1018 = vadd.f32 0.0, %v1017
      %v1019 = vpop.f32.mrb[0].mxu0
      %v1020 = vadd.f32 0.0, %v1019
      %v1021 = vpop.f32.mrb[0].mxu0
      %v1022 = vadd.f32 0.0, %v1021
      %v1023 = vpop.f32.mrb[0].mxu0
      %v1024 = vadd.f32 0.0, %v1023
      %1025 = vmatprep.mubr.bf16.mxu0 0
      %1026 = vmatmul.mubr.bf16.gmra.mrb[0].mxu0 %v981
      %v1027 = vpop.f32.mrb[0].mxu0
      %v1028 = vadd.f32 0.0, %v1027
      %v1029 = vpop.f32.mrb[0].mxu0
      %v1030 = vadd.f32 0.0, %v1029
      %v1031 = vpop.f32.mrb[0].mxu0
      %v1032 = vadd.f32 0.0, %v1031
      %v1033 = vpop.f32.mrb[0].mxu0
      %v1034 = vadd.f32 0.0, %v1033
      %1035 = vdwg.mxu0
      %v1036 = vadd.f32 %v939, %v1018
      %v1037 = vadd.f32 %v940, %v1020
      %v1038 = vadd.f32 %v941, %v1022
      %v1039 = vadd.f32 %v942, %v1024
      %v1040 = vadd.f32 %v943, %v1028
      %v1041 = vadd.f32 %v944, %v1030
      %v1042 = vadd.f32 %v945, %v1032
      %v1043 = vadd.f32 %v946, %v1034
      %s1044 = scalar_lea.vmem %s2, 64
      %v1045 = vld [vmem:[%s1044] sm:$0xf]
      %v1046 = vld [vmem:[%s1044 + $0x4] sm:$0xf]
      %v1047 = vld [vmem:[%s1044 + $0x8] sm:$0xf]
      %v1048 = vld [vmem:[%s1044 + $0xc] sm:$0xf]
      %v1053 = vunpack.c.l.b16 %v1045
      %v1054 = vunpack.c.l.b16 %v1046
      %v1055 = vunpack.c.l.b16 %v1047
      %v1056 = vunpack.c.l.b16 %v1048
      %v1057 = vpack.c.b16 %v1054, %v1053
      %v1058 = vpack.c.b16 %v1056, %v1055
      %1059 = vrot.lane.b32.xlu0 %v685, 124
      %v1060 = vpop.permute.xlu0 %1059
      %1061 = vrot.lane.b32.xlu0 %v686, 124
      %v1062 = vpop.permute.xlu0 %1061
      %1063 = vrot.lane.b32.xlu0 %v687, 124
      %v1064 = vpop.permute.xlu0 %1063
      %1065 = vrot.lane.b32.xlu0 %v688, 124
      %v1066 = vpop.permute.xlu0 %1065
      %vm1067 = vcmask 1014784
      %v1068 = vsel %vm1067, %v1060, %v1062
      %v1069 = vsel %vm1067, %v1064, %v1066
      %v1075 = vsel %vm722, %v1057, 0
      %v1078 = vsel %vm722, %v1058, 0
      %1080 = vmatprep.subr.bf16.mxu0 %v1062
      %1081 = vmatpush1.bf16.msra.mxu0 %v1068
      %1082 = vmatprep.subr.bf16.mxu0 %v1066
      %1083 = vmatpush1.bf16.msra.mxu0 %v1069
      %1084 = vmatprep.subr.bf16.mxu0 0
      %1085 = vmatpush1.bf16.msra.mxu0 0
      %1086 = vmatprep.subr.bf16.mxu0 0
      %1087 = vmatpush1.bf16.msra.mxu0 0
      %1088 = vmatprep.subr.bf16.mxu0 0
      %1089 = vmatpush1.bf16.msra.mxu0 0
      %1090 = vmatprep.subr.bf16.mxu0 0
      %1091 = vmatpush1.bf16.msra.mxu0 0
      %1092 = vmatprep.subr.bf16.mxu0 0
      %1093 = vmatpush1.bf16.msra.mxu0 0
      %1094 = vmatprep.subr.bf16.mxu0 0
      %1095 = vmatpush1.bf16.msra.mxu0 0
      %1096 = vmatprep.subr.bf16.mxu0 0
      %1097 = vmatpush1.bf16.msra.mxu0 0
      %1098 = vmatprep.subr.bf16.mxu0 0
      %1099 = vmatpush1.bf16.msra.mxu0 0
      %1100 = vmatprep.subr.bf16.mxu0 0
      %1101 = vmatpush1.bf16.msra.mxu0 0
      %1102 = vmatprep.subr.bf16.mxu0 0
      %1103 = vmatpush1.bf16.msra.mxu0 0
      %1104 = vmatprep.subr.bf16.mxu0 0
      %1105 = vmatpush1.bf16.msra.mxu0 0
      %1106 = vmatprep.subr.bf16.mxu0 0
      %1107 = vmatpush1.bf16.msra.mxu0 0
      %1108 = vmatprep.subr.bf16.mxu0 0
      %1109 = vmatpush1.bf16.msra.mxu0 0
      %1110 = vmatprep.subr.bf16.mxu0 0
      %1111 = vmatpush1.bf16.msra.mxu0 0
      %1112 = vmatprep.mubr.bf16.mxu0 0
      %1113 = vmatmul.mubr.bf16.gmra.mrb[0].mxu0 %v1075
      %v1114 = vpop.f32.mrb[0].mxu0
      %v1115 = vadd.f32 0.0, %v1114
      %v1116 = vpop.f32.mrb[0].mxu0
      %v1117 = vadd.f32 0.0, %v1116
      %v1118 = vpop.f32.mrb[0].mxu0
      %v1119 = vadd.f32 0.0, %v1118
      %v1120 = vpop.f32.mrb[0].mxu0
      %v1121 = vadd.f32 0.0, %v1120
      %1122 = vmatprep.mubr.bf16.mxu0 0
      %1123 = vmatmul.mubr.bf16.gmra.mrb[0].mxu0 %v1078
      %v1124 = vpop.f32.mrb[0].mxu0
      %v1125 = vadd.f32 0.0, %v1124
      %v1126 = vpop.f32.mrb[0].mxu0
      %v1127 = vadd.f32 0.0, %v1126
      %v1128 = vpop.f32.mrb[0].mxu0
      %v1129 = vadd.f32 0.0, %v1128
      %v1130 = vpop.f32.mrb[0].mxu0
      %v1131 = vadd.f32 0.0, %v1130
      %1132 = vdwg.mxu0
      %v1133 = vadd.f32 %v1036, %v1115
      %v1134 = vadd.f32 %v1037, %v1117
      %v1135 = vadd.f32 %v1038, %v1119
      %v1136 = vadd.f32 %v1039, %v1121
      %v1137 = vadd.f32 %v1040, %v1125
      %v1138 = vadd.f32 %v1041, %v1127
      %v1139 = vadd.f32 %v1042, %v1129
      %v1140 = vadd.f32 %v1043, %v1131
      %v1141 = vld [vmem:[%s5] sm:$0xff]
      %v1142 = vld [vmem:[%s5 + $0x8] sm:$0xff]
      %v1143 = vld [vmem:[%s5 + $0x10] sm:$0xff]
      %v1144 = vld [vmem:[%s5 + $0x18] sm:$0xff]
      %1146 = vset.pattern.permute.xlu0 0
      %1147 = vperm.xlu0 %1146, %v1141
      %v1148 = vpop.permute.xlu0 %1147
      %1151 = vset.pattern.permute.xlu0 0
      %1152 = vperm.xlu0 %1151, %v1142
      %v1153 = vpop.permute.xlu0 %1152
      %1156 = vset.pattern.permute.xlu0 0
      %1157 = vperm.xlu0 %1156, %v1143
      %v1158 = vpop.permute.xlu0 %1157
      %1161 = vset.pattern.permute.xlu0 0
      %1162 = vperm.xlu0 %1161, %v1144
      %v1163 = vpop.permute.xlu0 %1162
      %v1165 = vadd.f32 %v1133, %v1148
      %v1166 = vadd.f32 %v1134, %v1148
      %v1167 = vadd.f32 %v1135, %v1153
      %v1168 = vadd.f32 %v1136, %v1153
      %v1169 = vadd.f32 %v1137, %v1158
      %v1170 = vadd.f32 %v1138, %v1158
      %v1171 = vadd.f32 %v1139, %v1163
      %v1172 = vadd.f32 %v1140, %v1163
      %v1173 = vmax.f32 %v1165, 0.0
      %v1174 = vmax.f32 %v1166, 0.0
      %v1175 = vmax.f32 %v1167, 0.0
      %v1176 = vmax.f32 %v1168, 0.0
      %v1177 = vmax.f32 %v1169, 0.0
      %v1178 = vmax.f32 %v1170, 0.0
      %v1179 = vmax.f32 %v1171, 0.0
      %v1180 = vmax.f32 %v1172, 0.0
      %v1181 = vpack.c.bf16 %v1175, %v1173
      %v1182 = vpack.c.bf16 %v1176, %v1174
      %v1183 = vpack.c.bf16 %v1179, %v1177
      %v1184 = vpack.c.bf16 %v1180, %v1178
      %1185 = vst [vmem:[#allocation3] sm:$0xff] %v1181
      %vm1186 = vcmask 48128
      %1187 = vst.msk [vmem:[#allocation3 + $0x8] sm:$0xff] %vm1186, %v1182
      %1188 = vst [vmem:[#allocation3 + $0x10] sm:$0xff] %v1183
      %1189 = vst.msk [vmem:[#allocation3 + $0x18] sm:$0xff] %vm1186, %v1184
      %s1190 = ssub.s32 %s316, 3
      %s1191 = sadd.s32 %s316, 131
      %p1192 = scmp.gt.s32.totalorder %s1191, 16
      %p1193 = por %p636, %p1192
      // Predicated region
      $region53: #{cnn_block_forward.1} parent=47 // pred_check
        %p1194 = pneg %p1193
      $region54: #{cnn_block_forward.1} parent=47 // pred_check_branch
        %1196 = sbr.rel (%p1194) target = $region56
      $region55: #{cnn_block_forward.1} parent=47 // pred_region
        %v1197 = vlaneseq
        %v1198 = vand.u32 %v1197, 127
        %v1199 = vadd.s32 %v1198, 128
        %v1200 = vstv %s1190
        %v1201 = vadd.s32 %v1198, %v1200
        %v1202 = vadd.s32 %v1199, %v1200
        %vm1203 = vcmp.ge.s32.totalorder %v1201, 0
        %vm1204 = vcmp.ge.s32.totalorder %v1202, 0
        %vm1205 = vcmp.lt.s32.totalorder %v1201, 16
        %vm1206 = vcmp.lt.s32.totalorder %v1202, 16
        %vm1207 = vmand %vm1203, %vm1205
        %vm1208 = vmand %vm1204, %vm1206
        %v1209 = vld [vmem:[#allocation3] sm:$0xff]
        %v1210 = vld [vmem:[#allocation3 + $0x8] sm:$0xff]
        %v1211 = vld [vmem:[#allocation3 + $0x10] sm:$0xff]
        %v1212 = vld [vmem:[#allocation3 + $0x18] sm:$0xff]
        %v1213 = vsel %vm1207, 1, 0
        %v1214 = vsel %vm1208, 1, 0
        %vm1215 = vcmp.eq.s32.totalorder %v1213, 1
        %vm1216 = vcmp.eq.s32.totalorder %v1214, 1
        %vm1217 = vmpackc.low %vm1216, %vm1215
        %v1218 = vsel %vm1217, 65537, 0
        %v1219 = vlaneseq
        %v1220 = vshrl.u32 %v1219, 7
        %v1221 = vsub.s32 0, %v1220
        %v1222 = vrot.slane %v1218, %v1221
        %v1223 = vlaneseq
        %v1224 = vshrl.u32 %v1223, 7
        %v1225 = vsub.s32 4, %v1224
        %v1226 = vrot.slane %v1218, %v1225
        %vm1227 = vcmp.ne.s16.totalorder %v1222, 0
        %vm1228 = vcmp.ne.s16.totalorder %v1226, 0
        %v1229 = vsel %vm1227, %v1209, 0
        %v1230 = vsel %vm1228, %v1210, 0
        %v1231 = vsel %vm1227, %v1211, 0
        %v1232 = vsel %vm1228, %v1212, 0
        %1233 = vst [vmem:[#allocation3] sm:$0xff] %v1229
        %1234 = vst.msk [vmem:[#allocation3 + $0x8] sm:$0xff] %vm1186, %v1230
        %1235 = vst [vmem:[#allocation3 + $0x10] sm:$0xff] %v1231
        %1236 = vst.msk [vmem:[#allocation3 + $0x18] sm:$0xff] %vm1186, %v1232
      $region56: #{cnn_block_forward.1} parent=47 // pred_fallthru
        _
      %v1237 = vld [vmem:[%s3] sm:$0xf]
      %v1238 = vld [vmem:[%s3 + $0x4] sm:$0xf]
      %v1239 = vld [vmem:[%s3 + $0x8] sm:$0xf]
      %v1240 = vld [vmem:[%s3 + $0xc] sm:$0xf]
      %v1241 = vld [vmem:[%s3 + $0x10] sm:$0xf]
      %v1242 = vld [vmem:[%s3 + $0x14] sm:$0xf]
      %v1243 = vld [vmem:[%s3 + $0x18] sm:$0xf]
      %v1244 = vld [vmem:[%s3 + $0x1c] sm:$0xf]
      %v1245 = vld [vmem:[#allocation3] sm:$0xff]
      %v1246 = vld [vmem:[#allocation3 + $0x10] sm:$0xff]
      %s1247 = scalar_lea.vmem %s3, 32
      %v1248 = vld [vmem:[%s1247] sm:$0xf]
      %v1249 = vld [vmem:[%s1247 + $0x4] sm:$0xf]
      %v1250 = vld [vmem:[%s1247 + $0x8] sm:$0xf]
      %v1251 = vld [vmem:[%s1247 + $0xc] sm:$0xf]
      %v1252 = vld [vmem:[%s1247 + $0x10] sm:$0xf]
      %v1253 = vld [vmem:[%s1247 + $0x14] sm:$0xf]
      %v1254 = vld [vmem:[%s1247 + $0x18] sm:$0xf]
      %v1255 = vld [vmem:[%s1247 + $0x1c] sm:$0xf]
      %v1256 = vld [vmem:[#allocation3 + $0x8] sm:$0xff]
      %v1257 = vld [vmem:[#allocation3 + $0x18] sm:$0xff]
      %v1266 = vunpack.c.l.b16 %v1248
      %v1267 = vunpack.c.l.b16 %v1249
      %v1268 = vunpack.c.l.b16 %v1250
      %v1269 = vunpack.c.l.b16 %v1251
      %v1270 = vunpack.c.l.b16 %v1252
      %v1271 = vunpack.c.l.b16 %v1253
      %v1272 = vunpack.c.l.b16 %v1254
      %v1273 = vunpack.c.l.b16 %v1255
      %v1274 = vpack.c.b16 %v1267, %v1266
      %v1275 = vpack.c.b16 %v1269, %v1268
      %v1276 = vpack.c.b16 %v1271, %v1270
      %v1277 = vpack.c.b16 %v1273, %v1272
      %1282 = vrot.lane.b32.xlu0 %v1245, 127
      %v1283 = vpop.permute.xlu0 %1282
      %1284 = vrot.lane.b32.xlu0 %v1256, 127
      %v1285 = vpop.permute.xlu0 %1284
      %1286 = vrot.lane.b32.xlu0 %v1246, 127
      %v1287 = vpop.permute.xlu0 %1286
      %1288 = vrot.lane.b32.xlu0 %v1257, 127
      %v1289 = vpop.permute.xlu0 %1288
      %v1290 = vsel %vm346, %v1283, %v1285
      %v1291 = vsel %vm346, %v1287, %v1289
      %v1295 = vsel %vm722, %v1274, 0
      %v1298 = vsel %vm722, %v1275, 0
      %v1301 = vsel %vm722, %v1276, 0
      %v1304 = vsel %vm722, %v1277, 0
      %1306 = vmatprep.subr.bf16.mxu0 0
      %1307 = vmatpush1.bf16.msra.mxu0 %v1290
      %1308 = vmatprep.subr.bf16.mxu0 0
      %1309 = vmatpush1.bf16.msra.mxu0 %v1291
      %1310 = vmatprep.subr.bf16.mxu0 0
      %1311 = vmatpush1.bf16.msra.mxu0 0
      %1312 = vmatprep.subr.bf16.mxu0 0
      %1313 = vmatpush1.bf16.msra.mxu0 0
      %1314 = vmatprep.subr.bf16.mxu0 0
      %1315 = vmatpush1.bf16.msra.mxu0 0
      %1316 = vmatprep.subr.bf16.mxu0 0
      %1317 = vmatpush1.bf16.msra.mxu0 0
      %1318 = vmatprep.subr.bf16.mxu0 0
      %1319 = vmatpush1.bf16.msra.mxu0 0
      %1320 = vmatprep.subr.bf16.mxu0 0
      %1321 = vmatpush1.bf16.msra.mxu0 0
      %1322 = vmatprep.subr.bf16.mxu0 0
      %1323 = vmatpush1.bf16.msra.mxu0 0
      %1324 = vmatprep.subr.bf16.mxu0 0
      %1325 = vmatpush1.bf16.msra.mxu0 0
      %1326 = vmatprep.subr.bf16.mxu0 0
      %1327 = vmatpush1.bf16.msra.mxu0 0
      %1328 = vmatprep.subr.bf16.mxu0 0
      %1329 = vmatpush1.bf16.msra.mxu0 0
      %1330 = vmatprep.subr.bf16.mxu0 0
      %1331 = vmatpush1.bf16.msra.mxu0 0
      %1332 = vmatprep.subr.bf16.mxu0 0
      %1333 = vmatpush1.bf16.msra.mxu0 0
      %1334 = vmatprep.subr.bf16.mxu0 0
      %1335 = vmatpush1.bf16.msra.mxu0 0
      %1336 = vmatprep.subr.bf16.mxu0 0
      %1337 = vmatpush1.bf16.msra.mxu0 0
      %1338 = vmatprep.mubr.bf16.mxu0 0
      %1339 = vmatmul.mubr.bf16.gmra.mrb[0].mxu0 %v1295
      %v1340 = vpop.f32.mrb[0].mxu0
      %v1341 = vadd.f32 0.0, %v1340
      %v1342 = vpop.f32.mrb[0].mxu0
      %v1343 = vpop.f32.mrb[0].mxu0
      %v1344 = vadd.f32 0.0, %v1343
      %v1345 = vpop.f32.mrb[0].mxu0
      %1346 = vmatprep.mubr.bf16.mxu0 0
      %1347 = vmatmul.mubr.bf16.gmra.mrb[0].mxu0 %v1298
      %v1348 = vpop.f32.mrb[0].mxu0
      %v1349 = vadd.f32 0.0, %v1348
      %v1350 = vpop.f32.mrb[0].mxu0
      %v1351 = vpop.f32.mrb[0].mxu0
      %v1352 = vadd.f32 0.0, %v1351
      %v1353 = vpop.f32.mrb[0].mxu0
      %1354 = vmatprep.mubr.bf16.mxu0 0
      %1355 = vmatmul.mubr.bf16.gmra.mrb[0].mxu0 %v1301
      %v1356 = vpop.f32.mrb[0].mxu0
      %v1357 = vadd.f32 0.0, %v1356
      %v1358 = vpop.f32.mrb[0].mxu0
      %v1359 = vpop.f32.mrb[0].mxu0
      %v1360 = vadd.f32 0.0, %v1359
      %v1361 = vpop.f32.mrb[0].mxu0
      %1362 = vmatprep.mubr.bf16.mxu0 0
      %1363 = vmatmul.mubr.bf16.gmra.mrb[0].mxu0 %v1304
      %v1364 = vpop.f32.mrb[0].mxu0
      %v1365 = vadd.f32 0.0, %v1364
      %v1366 = vpop.f32.mrb[0].mxu0
      %v1367 = vpop.f32.mrb[0].mxu0
      %v1368 = vadd.f32 0.0, %v1367
      %v1369 = vpop.f32.mrb[0].mxu0
      %1370 = vdwg.mxu0
      %v1379 = vunpack.c.l.b16 %v1237
      %v1380 = vunpack.c.l.b16 %v1238
      %v1381 = vunpack.c.l.b16 %v1239
      %v1382 = vunpack.c.l.b16 %v1240
      %v1383 = vunpack.c.l.b16 %v1241
      %v1384 = vunpack.c.l.b16 %v1242
      %v1385 = vunpack.c.l.b16 %v1243
      %v1386 = vunpack.c.l.b16 %v1244
      %v1387 = vpack.c.b16 %v1380, %v1379
      %v1388 = vpack.c.b16 %v1382, %v1381
      %v1389 = vpack.c.b16 %v1384, %v1383
      %v1390 = vpack.c.b16 %v1386, %v1385
      %v1392 = vsel %vm722, %v1387, 0
      %v1395 = vsel %vm722, %v1388, 0
      %v1398 = vsel %vm722, %v1389, 0
      %v1401 = vsel %vm722, %v1390, 0
      %1403 = vmatprep.subr.bf16.mxu0 0
      %1404 = vmatpush1.bf16.msra.mxu0 %v1245
      %1405 = vmatprep.subr.bf16.mxu0 0
      %1406 = vmatpush1.bf16.msra.mxu0 %v1246
      %1407 = vmatprep.subr.bf16.mxu0 0
      %1408 = vmatpush1.bf16.msra.mxu0 0
      %1409 = vmatprep.subr.bf16.mxu0 0
      %1410 = vmatpush1.bf16.msra.mxu0 0
      %1411 = vmatprep.subr.bf16.mxu0 0
      %1412 = vmatpush1.bf16.msra.mxu0 0
      %1413 = vmatprep.subr.bf16.mxu0 0
      %1414 = vmatpush1.bf16.msra.mxu0 0
      %1415 = vmatprep.subr.bf16.mxu0 0
      %1416 = vmatpush1.bf16.msra.mxu0 0
      %1417 = vmatprep.subr.bf16.mxu0 0
      %1418 = vmatpush1.bf16.msra.mxu0 0
      %1419 = vmatprep.subr.bf16.mxu0 0
      %1420 = vmatpush1.bf16.msra.mxu0 0
      %1421 = vmatprep.subr.bf16.mxu0 0
      %1422 = vmatpush1.bf16.msra.mxu0 0
      %1423 = vmatprep.subr.bf16.mxu0 0
      %1424 = vmatpush1.bf16.msra.mxu0 0
      %1425 = vmatprep.subr.bf16.mxu0 0
      %1426 = vmatpush1.bf16.msra.mxu0 0
      %1427 = vmatprep.subr.bf16.mxu0 0
      %1428 = vmatpush1.bf16.msra.mxu0 0
      %1429 = vmatprep.subr.bf16.mxu0 0
      %1430 = vmatpush1.bf16.msra.mxu0 0
      %1431 = vmatprep.subr.bf16.mxu0 0
      %1432 = vmatpush1.bf16.msra.mxu0 0
      %1433 = vmatprep.subr.bf16.mxu0 0
      %1434 = vmatpush1.bf16.msra.mxu0 0
      %1435 = vmatprep.mubr.bf16.mxu0 0
      %1436 = vmatmul.mubr.bf16.gmra.mrb[0].mxu0 %v1392
      %v1437 = vpop.f32.mrb[0].mxu0
      %v1438 = vadd.f32 %v1341, %v1437
      %v1439 = vpop.f32.mrb[0].mxu0
      %v1440 = vpop.f32.mrb[0].mxu0
      %v1441 = vadd.f32 %v1344, %v1440
      %v1442 = vpop.f32.mrb[0].mxu0
      %1443 = vmatprep.mubr.bf16.mxu0 0
      %1444 = vmatmul.mubr.bf16.gmra.mrb[0].mxu0 %v1395
      %v1445 = vpop.f32.mrb[0].mxu0
      %v1446 = vadd.f32 %v1349, %v1445
      %v1447 = vpop.f32.mrb[0].mxu0
      %v1448 = vpop.f32.mrb[0].mxu0
      %v1449 = vadd.f32 %v1352, %v1448
      %v1450 = vpop.f32.mrb[0].mxu0
      %1451 = vmatprep.mubr.bf16.mxu0 0
      %1452 = vmatmul.mubr.bf16.gmra.mrb[0].mxu0 %v1398
      %v1453 = vpop.f32.mrb[0].mxu0
      %v1454 = vadd.f32 %v1357, %v1453
      %v1455 = vpop.f32.mrb[0].mxu0
      %v1456 = vpop.f32.mrb[0].mxu0
      %v1457 = vadd.f32 %v1360, %v1456
      %v1458 = vpop.f32.mrb[0].mxu0
      %1459 = vmatprep.mubr.bf16.mxu0 0
      %1460 = vmatmul.mubr.bf16.gmra.mrb[0].mxu0 %v1401
      %v1461 = vpop.f32.mrb[0].mxu0
      %v1462 = vadd.f32 %v1365, %v1461
      %v1463 = vpop.f32.mrb[0].mxu0
      %v1464 = vpop.f32.mrb[0].mxu0
      %v1465 = vadd.f32 %v1368, %v1464
      %v1466 = vpop.f32.mrb[0].mxu0
      %1467 = vdwg.mxu0
      %s1468 = scalar_lea.vmem %s3, 64
      %v1469 = vld [vmem:[%s1468] sm:$0xf]
      %v1470 = vld [vmem:[%s1468 + $0x4] sm:$0xf]
      %v1471 = vld [vmem:[%s1468 + $0x8] sm:$0xf]
      %v1472 = vld [vmem:[%s1468 + $0xc] sm:$0xf]
      %v1473 = vld [vmem:[%s1468 + $0x10] sm:$0xf]
      %v1474 = vld [vmem:[%s1468 + $0x14] sm:$0xf]
      %v1475 = vld [vmem:[%s1468 + $0x18] sm:$0xf]
      %v1476 = vld [vmem:[%s1468 + $0x1c] sm:$0xf]
      %v1485 = vunpack.c.l.b16 %v1469
      %v1486 = vunpack.c.l.b16 %v1470
      %v1487 = vunpack.c.l.b16 %v1471
      %v1488 = vunpack.c.l.b16 %v1472
      %v1489 = vunpack.c.l.b16 %v1473
      %v1490 = vunpack.c.l.b16 %v1474
      %v1491 = vunpack.c.l.b16 %v1475
      %v1492 = vunpack.c.l.b16 %v1476
      %v1493 = vpack.c.b16 %v1486, %v1485
      %v1494 = vpack.c.b16 %v1488, %v1487
      %v1495 = vpack.c.b16 %v1490, %v1489
      %v1496 = vpack.c.b16 %v1492, %v1491
      %1497 = vrot.lane.b32.xlu0 %v1245, 126
      %v1498 = vpop.permute.xlu0 %1497
      %1499 = vrot.lane.b32.xlu0 %v1256, 126
      %v1500 = vpop.permute.xlu0 %1499
      %1501 = vrot.lane.b32.xlu0 %v1246, 126
      %v1502 = vpop.permute.xlu0 %1501
      %1503 = vrot.lane.b32.xlu0 %v1257, 126
      %v1504 = vpop.permute.xlu0 %1503
      %v1505 = vsel %vm509, %v1498, %v1500
      %v1506 = vsel %vm509, %v1502, %v1504
      %v1510 = vsel %vm722, %v1493, 0
      %v1513 = vsel %vm722, %v1494, 0
      %v1516 = vsel %vm722, %v1495, 0
      %v1519 = vsel %vm722, %v1496, 0
      %1521 = vmatprep.subr.bf16.mxu0 0
      %1522 = vmatpush1.bf16.msra.mxu0 %v1505
      %1523 = vmatprep.subr.bf16.mxu0 0
      %1524 = vmatpush1.bf16.msra.mxu0 %v1506
      %1525 = vmatprep.subr.bf16.mxu0 0
      %1526 = vmatpush1.bf16.msra.mxu0 0
      %1527 = vmatprep.subr.bf16.mxu0 0
      %1528 = vmatpush1.bf16.msra.mxu0 0
      %1529 = vmatprep.subr.bf16.mxu0 0
      %1530 = vmatpush1.bf16.msra.mxu0 0
      %1531 = vmatprep.subr.bf16.mxu0 0
      %1532 = vmatpush1.bf16.msra.mxu0 0
      %1533 = vmatprep.subr.bf16.mxu0 0
      %1534 = vmatpush1.bf16.msra.mxu0 0
      %1535 = vmatprep.subr.bf16.mxu0 0
      %1536 = vmatpush1.bf16.msra.mxu0 0
      %1537 = vmatprep.subr.bf16.mxu0 0
      %1538 = vmatpush1.bf16.msra.mxu0 0
      %1539 = vmatprep.subr.bf16.mxu0 0
      %1540 = vmatpush1.bf16.msra.mxu0 0
      %1541 = vmatprep.subr.bf16.mxu0 0
      %1542 = vmatpush1.bf16.msra.mxu0 0
      %1543 = vmatprep.subr.bf16.mxu0 0
      %1544 = vmatpush1.bf16.msra.mxu0 0
      %1545 = vmatprep.subr.bf16.mxu0 0
      %1546 = vmatpush1.bf16.msra.mxu0 0
      %1547 = vmatprep.subr.bf16.mxu0 0
      %1548 = vmatpush1.bf16.msra.mxu0 0
      %1549 = vmatprep.subr.bf16.mxu0 0
      %1550 = vmatpush1.bf16.msra.mxu0 0
      %1551 = vmatprep.subr.bf16.mxu0 0
      %1552 = vmatpush1.bf16.msra.mxu0 0
      %1553 = vmatprep.mubr.bf16.mxu0 0
      %1554 = vmatmul.mubr.bf16.gmra.mrb[0].mxu0 %v1510
      %v1555 = vpop.f32.mrb[0].mxu0
      %v1556 = vadd.f32 0.0, %v1555
      %v1557 = vpop.f32.mrb[0].mxu0
      %v1558 = vpop.f32.mrb[0].mxu0
      %v1559 = vadd.f32 0.0, %v1558
      %v1560 = vpop.f32.mrb[0].mxu0
      %1561 = vmatprep.mubr.bf16.mxu0 0
      %1562 = vmatmul.mubr.bf16.gmra.mrb[0].mxu0 %v1513
      %v1563 = vpop.f32.mrb[0].mxu0
      %v1564 = vadd.f32 0.0, %v1563
      %v1565 = vpop.f32.mrb[0].mxu0
      %v1566 = vpop.f32.mrb[0].mxu0
      %v1567 = vadd.f32 0.0, %v1566
      %v1568 = vpop.f32.mrb[0].mxu0
      %1569 = vmatprep.mubr.bf16.mxu0 0
      %1570 = vmatmul.mubr.bf16.gmra.mrb[0].mxu0 %v1516
      %v1571 = vpop.f32.mrb[0].mxu0
      %v1572 = vadd.f32 0.0, %v1571
      %v1573 = vpop.f32.mrb[0].mxu0
      %v1574 = vpop.f32.mrb[0].mxu0
      %v1575 = vadd.f32 0.0, %v1574
      %v1576 = vpop.f32.mrb[0].mxu0
      %1577 = vmatprep.mubr.bf16.mxu0 0
      %1578 = vmatmul.mubr.bf16.gmra.mrb[0].mxu0 %v1519
      %v1579 = vpop.f32.mrb[0].mxu0
      %v1580 = vadd.f32 0.0, %v1579
      %v1581 = vpop.f32.mrb[0].mxu0
      %v1582 = vpop.f32.mrb[0].mxu0
      %v1583 = vadd.f32 0.0, %v1582
      %v1584 = vpop.f32.mrb[0].mxu0
      %1585 = vdwg.mxu0
      %v1586 = vadd.f32 %v1438, %v1556
      %v1587 = vadd.f32 %v1441, %v1559
      %v1588 = vadd.f32 %v1446, %v1564
      %v1589 = vadd.f32 %v1449, %v1567
      %v1590 = vadd.f32 %v1454, %v1572
      %v1591 = vadd.f32 %v1457, %v1575
      %v1592 = vadd.f32 %v1462, %v1580
      %v1593 = vadd.f32 %v1465, %v1583
      %s1594 = scalar_lea.vmem %s3, 96
      %v1595 = vld [vmem:[%s1594] sm:$0xf]
      %v1596 = vld [vmem:[%s1594 + $0x4] sm:$0xf]
      %v1597 = vld [vmem:[%s1594 + $0x8] sm:$0xf]
      %v1598 = vld [vmem:[%s1594 + $0xc] sm:$0xf]
      %v1599 = vld [vmem:[%s1594 + $0x10] sm:$0xf]
      %v1600 = vld [vmem:[%s1594 + $0x14] sm:$0xf]
      %v1601 = vld [vmem:[%s1594 + $0x18] sm:$0xf]
      %v1602 = vld [vmem:[%s1594 + $0x1c] sm:$0xf]
      %v1611 = vunpack.c.l.b16 %v1595
      %v1612 = vunpack.c.l.b16 %v1596
      %v1613 = vunpack.c.l.b16 %v1597
      %v1614 = vunpack.c.l.b16 %v1598
      %v1615 = vunpack.c.l.b16 %v1599
      %v1616 = vunpack.c.l.b16 %v1600
      %v1617 = vunpack.c.l.b16 %v1601
      %v1618 = vunpack.c.l.b16 %v1602
      %v1619 = vpack.c.b16 %v1612, %v1611
      %v1620 = vpack.c.b16 %v1614, %v1613
      %v1621 = vpack.c.b16 %v1616, %v1615
      %v1622 = vpack.c.b16 %v1618, %v1617
      %1623 = vrot.lane.b32.xlu0 %v1245, 125
      %v1624 = vpop.permute.xlu0 %1623
      %1625 = vrot.lane.b32.xlu0 %v1256, 125
      %v1626 = vpop.permute.xlu0 %1625
      %1627 = vrot.lane.b32.xlu0 %v1246, 125
      %v1628 = vpop.permute.xlu0 %1627
      %1629 = vrot.lane.b32.xlu0 %v1257, 125
      %v1630 = vpop.permute.xlu0 %1629
      %v1631 = vsel %vm970, %v1624, %v1626
      %v1632 = vsel %vm970, %v1628, %v1630
      %v1636 = vsel %vm722, %v1619, 0
      %v1639 = vsel %vm722, %v1620, 0
      %v1642 = vsel %vm722, %v1621, 0
      %v1645 = vsel %vm722, %v1622, 0
      %1647 = vmatprep.subr.bf16.mxu0 0
      %1648 = vmatpush1.bf16.msra.mxu0 %v1631
      %1649 = vmatprep.subr.bf16.mxu0 0
      %1650 = vmatpush1.bf16.msra.mxu0 %v1632
      %1651 = vmatprep.subr.bf16.mxu0 0
      %1652 = vmatpush1.bf16.msra.mxu0 0
      %1653 = vmatprep.subr.bf16.mxu0 0
      %1654 = vmatpush1.bf16.msra.mxu0 0
      %1655 = vmatprep.subr.bf16.mxu0 0
      %1656 = vmatpush1.bf16.msra.mxu0 0
      %1657 = vmatprep.subr.bf16.mxu0 0
      %1658 = vmatpush1.bf16.msra.mxu0 0
      %1659 = vmatprep.subr.bf16.mxu0 0
      %1660 = vmatpush1.bf16.msra.mxu0 0
      %1661 = vmatprep.subr.bf16.mxu0 0
      %1662 = vmatpush1.bf16.msra.mxu0 0
      %1663 = vmatprep.subr.bf16.mxu0 0
      %1664 = vmatpush1.bf16.msra.mxu0 0
      %1665 = vmatprep.subr.bf16.mxu0 0
      %1666 = vmatpush1.bf16.msra.mxu0 0
      %1667 = vmatprep.subr.bf16.mxu0 0
      %1668 = vmatpush1.bf16.msra.mxu0 0
      %1669 = vmatprep.subr.bf16.mxu0 0
      %1670 = vmatpush1.bf16.msra.mxu0 0
      %1671 = vmatprep.subr.bf16.mxu0 0
      %1672 = vmatpush1.bf16.msra.mxu0 0
      %1673 = vmatprep.subr.bf16.mxu0 0
      %1674 = vmatpush1.bf16.msra.mxu0 0
      %1675 = vmatprep.subr.bf16.mxu0 0
      %1676 = vmatpush1.bf16.msra.mxu0 0
      %1677 = vmatprep.subr.bf16.mxu0 0
      %1678 = vmatpush1.bf16.msra.mxu0 0
      %1679 = vmatprep.mubr.bf16.mxu0 0
      %1680 = vmatmul.mubr.bf16.gmra.mrb[0].mxu0 %v1636
      %v1681 = vpop.f32.mrb[0].mxu0
      %v1682 = vadd.f32 0.0, %v1681
      %v1683 = vpop.f32.mrb[0].mxu0
      %v1684 = vpop.f32.mrb[0].mxu0
      %v1685 = vadd.f32 0.0, %v1684
      %v1686 = vpop.f32.mrb[0].mxu0
      %1687 = vmatprep.mubr.bf16.mxu0 0
      %1688 = vmatmul.mubr.bf16.gmra.mrb[0].mxu0 %v1639
      %v1689 = vpop.f32.mrb[0].mxu0
      %v1690 = vadd.f32 0.0, %v1689
      %v1691 = vpop.f32.mrb[0].mxu0
      %v1692 = vpop.f32.mrb[0].mxu0
      %v1693 = vadd.f32 0.0, %v1692
      %v1694 = vpop.f32.mrb[0].mxu0
      %1695 = vmatprep.mubr.bf16.mxu0 0
      %1696 = vmatmul.mubr.bf16.gmra.mrb[0].mxu0 %v1642
      %v1697 = vpop.f32.mrb[0].mxu0
      %v1698 = vadd.f32 0.0, %v1697
      %v1699 = vpop.f32.mrb[0].mxu0
      %v1700 = vpop.f32.mrb[0].mxu0
      %v1701 = vadd.f32 0.0, %v1700
      %v1702 = vpop.f32.mrb[0].mxu0
      %1703 = vmatprep.mubr.bf16.mxu0 0
      %1704 = vmatmul.mubr.bf16.gmra.mrb[0].mxu0 %v1645
      %v1705 = vpop.f32.mrb[0].mxu0
      %v1706 = vadd.f32 0.0, %v1705
      %v1707 = vpop.f32.mrb[0].mxu0
      %v1708 = vpop.f32.mrb[0].mxu0
      %v1709 = vadd.f32 0.0, %v1708
      %v1710 = vpop.f32.mrb[0].mxu0
      %1711 = vdwg.mxu0
      %v1712 = vadd.f32 %v1586, %v1682
      %v1713 = vadd.f32 %v1587, %v1685
      %v1714 = vadd.f32 %v1588, %v1690
      %v1715 = vadd.f32 %v1589, %v1693
      %v1716 = vadd.f32 %v1590, %v1698
      %v1717 = vadd.f32 %v1591, %v1701
      %v1718 = vadd.f32 %v1592, %v1706
      %v1719 = vadd.f32 %v1593, %v1709
      %s1720 = scalar_lea.vmem %s3, 128
      %v1721 = vld [vmem:[%s1720] sm:$0xf]
      %v1722 = vld [vmem:[%s1720 + $0x4] sm:$0xf]
      %v1723 = vld [vmem:[%s1720 + $0x8] sm:$0xf]
      %v1724 = vld [vmem:[%s1720 + $0xc] sm:$0xf]
      %v1725 = vld [vmem:[%s1720 + $0x10] sm:$0xf]
      %v1726 = vld [vmem:[%s1720 + $0x14] sm:$0xf]
      %v1727 = vld [vmem:[%s1720 + $0x18] sm:$0xf]
      %v1728 = vld [vmem:[%s1720 + $0x1c] sm:$0xf]
      %v1737 = vunpack.c.l.b16 %v1721
      %v1738 = vunpack.c.l.b16 %v1722
      %v1739 = vunpack.c.l.b16 %v1723
      %v1740 = vunpack.c.l.b16 %v1724
      %v1741 = vunpack.c.l.b16 %v1725
      %v1742 = vunpack.c.l.b16 %v1726
      %v1743 = vunpack.c.l.b16 %v1727
      %v1744 = vunpack.c.l.b16 %v1728
      %v1745 = vpack.c.b16 %v1738, %v1737
      %v1746 = vpack.c.b16 %v1740, %v1739
      %v1747 = vpack.c.b16 %v1742, %v1741
      %v1748 = vpack.c.b16 %v1744, %v1743
      %1749 = vrot.lane.b32.xlu0 %v1245, 124
      %v1750 = vpop.permute.xlu0 %1749
      %1751 = vrot.lane.b32.xlu0 %v1256, 124
      %v1752 = vpop.permute.xlu0 %1751
      %1753 = vrot.lane.b32.xlu0 %v1246, 124
      %v1754 = vpop.permute.xlu0 %1753
      %1755 = vrot.lane.b32.xlu0 %v1257, 124
      %v1756 = vpop.permute.xlu0 %1755
      %v1757 = vsel %vm1067, %v1750, %v1752
      %v1758 = vsel %vm1067, %v1754, %v1756
      %v1762 = vsel %vm722, %v1745, 0
      %v1765 = vsel %vm722, %v1746, 0
      %v1768 = vsel %vm722, %v1747, 0
      %v1771 = vsel %vm722, %v1748, 0
      %1773 = vmatprep.subr.bf16.mxu0 0
      %1774 = vmatpush1.bf16.msra.mxu0 %v1757
      %1775 = vmatprep.subr.bf16.mxu0 0
      %1776 = vmatpush1.bf16.msra.mxu0 %v1758
      %1777 = vmatprep.subr.bf16.mxu0 0
      %1778 = vmatpush1.bf16.msra.mxu0 0
      %1779 = vmatprep.subr.bf16.mxu0 0
      %1780 = vmatpush1.bf16.msra.mxu0 0
      %1781 = vmatprep.subr.bf16.mxu0 0
      %1782 = vmatpush1.bf16.msra.mxu0 0
      %1783 = vmatprep.subr.bf16.mxu0 0
      %1784 = vmatpush1.bf16.msra.mxu0 0
      %1785 = vmatprep.subr.bf16.mxu0 0
      %1786 = vmatpush1.bf16.msra.mxu0 0
      %1787 = vmatprep.subr.bf16.mxu0 0
      %1788 = vmatpush1.bf16.msra.mxu0 0
      %1789 = vmatprep.subr.bf16.mxu0 0
      %1790 = vmatpush1.bf16.msra.mxu0 0
      %1791 = vmatprep.subr.bf16.mxu0 0
      %1792 = vmatpush1.bf16.msra.mxu0 0
      %1793 = vmatprep.subr.bf16.mxu0 0
      %1794 = vmatpush1.bf16.msra.mxu0 0
      %1795 = vmatprep.subr.bf16.mxu0 0
      %1796 = vmatpush1.bf16.msra.mxu0 0
      %1797 = vmatprep.subr.bf16.mxu0 0
      %1798 = vmatpush1.bf16.msra.mxu0 0
      %1799 = vmatprep.subr.bf16.mxu0 0
      %1800 = vmatpush1.bf16.msra.mxu0 0
      %1801 = vmatprep.subr.bf16.mxu0 0
      %1802 = vmatpush1.bf16.msra.mxu0 0
      %1803 = vmatprep.subr.bf16.mxu0 0
      %1804 = vmatpush1.bf16.msra.mxu0 0
      %1805 = vmatprep.mubr.bf16.mxu0 0
      %1806 = vmatmul.mubr.bf16.gmra.mrb[0].mxu0 %v1762
      %v1807 = vpop.f32.mrb[0].mxu0
      %v1808 = vadd.f32 0.0, %v1807
      %v1809 = vpop.f32.mrb[0].mxu0
      %v1810 = vpop.f32.mrb[0].mxu0
      %v1811 = vadd.f32 0.0, %v1810
      %v1812 = vpop.f32.mrb[0].mxu0
      %1813 = vmatprep.mubr.bf16.mxu0 0
      %1814 = vmatmul.mubr.bf16.gmra.mrb[0].mxu0 %v1765
      %v1815 = vpop.f32.mrb[0].mxu0
      %v1816 = vadd.f32 0.0, %v1815
      %v1817 = vpop.f32.mrb[0].mxu0
      %v1818 = vpop.f32.mrb[0].mxu0
      %v1819 = vadd.f32 0.0, %v1818
      %v1820 = vpop.f32.mrb[0].mxu0
      %1821 = vmatprep.mubr.bf16.mxu0 0
      %1822 = vmatmul.mubr.bf16.gmra.mrb[0].mxu0 %v1768
      %v1823 = vpop.f32.mrb[0].mxu0
      %v1824 = vadd.f32 0.0, %v1823
      %v1825 = vpop.f32.mrb[0].mxu0
      %v1826 = vpop.f32.mrb[0].mxu0
      %v1827 = vadd.f32 0.0, %v1826
      %v1828 = vpop.f32.mrb[0].mxu0
      %1829 = vmatprep.mubr.bf16.mxu0 0
      %1830 = vmatmul.mubr.bf16.gmra.mrb[0].mxu0 %v1771
      %v1831 = vpop.f32.mrb[0].mxu0
      %v1832 = vadd.f32 0.0, %v1831
      %v1833 = vpop.f32.mrb[0].mxu0
      %v1834 = vpop.f32.mrb[0].mxu0
      %v1835 = vadd.f32 0.0, %v1834
      %v1836 = vpop.f32.mrb[0].mxu0
      %1837 = vdwg.mxu0
      %v1838 = vadd.f32 %v1712, %v1808
      %v1839 = vadd.f32 %v1713, %v1811
      %v1840 = vadd.f32 %v1714, %v1816
      %v1841 = vadd.f32 %v1715, %v1819
      %v1842 = vadd.f32 %v1716, %v1824
      %v1843 = vadd.f32 %v1717, %v1827
      %v1844 = vadd.f32 %v1718, %v1832
      %v1845 = vadd.f32 %v1719, %v1835
      %s1846 = scalar_lea.vmem %s3, 160
      %v1847 = vld [vmem:[%s1846] sm:$0xf]
      %v1848 = vld [vmem:[%s1846 + $0x4] sm:$0xf]
      %v1849 = vld [vmem:[%s1846 + $0x8] sm:$0xf]
      %v1850 = vld [vmem:[%s1846 + $0xc] sm:$0xf]
      %v1851 = vld [vmem:[%s1846 + $0x10] sm:$0xf]
      %v1852 = vld [vmem:[%s1846 + $0x14] sm:$0xf]
      %v1853 = vld [vmem:[%s1846 + $0x18] sm:$0xf]
      %v1854 = vld [vmem:[%s1846 + $0x1c] sm:$0xf]
      %v1863 = vunpack.c.l.b16 %v1847
      %v1864 = vunpack.c.l.b16 %v1848
      %v1865 = vunpack.c.l.b16 %v1849
      %v1866 = vunpack.c.l.b16 %v1850
      %v1867 = vunpack.c.l.b16 %v1851
      %v1868 = vunpack.c.l.b16 %v1852
      %v1869 = vunpack.c.l.b16 %v1853
      %v1870 = vunpack.c.l.b16 %v1854
      %v1871 = vpack.c.b16 %v1864, %v1863
      %v1872 = vpack.c.b16 %v1866, %v1865
      %v1873 = vpack.c.b16 %v1868, %v1867
      %v1874 = vpack.c.b16 %v1870, %v1869
      %1875 = vrot.lane.b32.xlu0 %v1245, 123
      %v1876 = vpop.permute.xlu0 %1875
      %1877 = vrot.lane.b32.xlu0 %v1256, 123
      %v1878 = vpop.permute.xlu0 %1877
      %1879 = vrot.lane.b32.xlu0 %v1246, 123
      %v1880 = vpop.permute.xlu0 %1879
      %1881 = vrot.lane.b32.xlu0 %v1257, 123
      %v1882 = vpop.permute.xlu0 %1881
      %vm1883 = vcmask 1006592
      %v1884 = vsel %vm1883, %v1876, %v1878
      %v1885 = vsel %vm1883, %v1880, %v1882
      %v1889 = vsel %vm722, %v1871, 0
      %v1892 = vsel %vm722, %v1872, 0
      %v1895 = vsel %vm722, %v1873, 0
      %v1898 = vsel %vm722, %v1874, 0
      %1900 = vmatprep.subr.bf16.mxu0 0
      %1901 = vmatpush1.bf16.msra.mxu0 %v1884
      %1902 = vmatprep.subr.bf16.mxu0 0
      %1903 = vmatpush1.bf16.msra.mxu0 %v1885
      %1904 = vmatprep.subr.bf16.mxu0 0
      %1905 = vmatpush1.bf16.msra.mxu0 0
      %1906 = vmatprep.subr.bf16.mxu0 0
      %1907 = vmatpush1.bf16.msra.mxu0 0
      %1908 = vmatprep.subr.bf16.mxu0 0
      %1909 = vmatpush1.bf16.msra.mxu0 0
      %1910 = vmatprep.subr.bf16.mxu0 0
      %1911 = vmatpush1.bf16.msra.mxu0 0
      %1912 = vmatprep.subr.bf16.mxu0 0
      %1913 = vmatpush1.bf16.msra.mxu0 0
      %1914 = vmatprep.subr.bf16.mxu0 0
      %1915 = vmatpush1.bf16.msra.mxu0 0
      %1916 = vmatprep.subr.bf16.mxu0 0
      %1917 = vmatpush1.bf16.msra.mxu0 0
      %1918 = vmatprep.subr.bf16.mxu0 0
      %1919 = vmatpush1.bf16.msra.mxu0 0
      %1920 = vmatprep.subr.bf16.mxu0 0
      %1921 = vmatpush1.bf16.msra.mxu0 0
      %1922 = vmatprep.subr.bf16.mxu0 0
      %1923 = vmatpush1.bf16.msra.mxu0 0
      %1924 = vmatprep.subr.bf16.mxu0 0
      %1925 = vmatpush1.bf16.msra.mxu0 0
      %1926 = vmatprep.subr.bf16.mxu0 0
      %1927 = vmatpush1.bf16.msra.mxu0 0
      %1928 = vmatprep.subr.bf16.mxu0 0
      %1929 = vmatpush1.bf16.msra.mxu0 0
      %1930 = vmatprep.subr.bf16.mxu0 0
      %1931 = vmatpush1.bf16.msra.mxu0 0
      %1932 = vmatprep.mubr.bf16.mxu0 0
      %1933 = vmatmul.mubr.bf16.gmra.mrb[0].mxu0 %v1889
      %v1934 = vpop.f32.mrb[0].mxu0
      %v1935 = vadd.f32 0.0, %v1934
      %v1936 = vpop.f32.mrb[0].mxu0
      %v1937 = vpop.f32.mrb[0].mxu0
      %v1938 = vadd.f32 0.0, %v1937
      %v1939 = vpop.f32.mrb[0].mxu0
      %1940 = vmatprep.mubr.bf16.mxu0 0
      %1941 = vmatmul.mubr.bf16.gmra.mrb[0].mxu0 %v1892
      %v1942 = vpop.f32.mrb[0].mxu0
      %v1943 = vadd.f32 0.0, %v1942
      %v1944 = vpop.f32.mrb[0].mxu0
      %v1945 = vpop.f32.mrb[0].mxu0
      %v1946 = vadd.f32 0.0, %v1945
      %v1947 = vpop.f32.mrb[0].mxu0
      %1948 = vmatprep.mubr.bf16.mxu0 0
      %1949 = vmatmul.mubr.bf16.gmra.mrb[0].mxu0 %v1895
      %v1950 = vpop.f32.mrb[0].mxu0
      %v1951 = vadd.f32 0.0, %v1950
      %v1952 = vpop.f32.mrb[0].mxu0
      %v1953 = vpop.f32.mrb[0].mxu0
      %v1954 = vadd.f32 0.0, %v1953
      %v1955 = vpop.f32.mrb[0].mxu0
      %1956 = vmatprep.mubr.bf16.mxu0 0
      %1957 = vmatmul.mubr.bf16.gmra.mrb[0].mxu0 %v1898
      %v1958 = vpop.f32.mrb[0].mxu0
      %v1959 = vadd.f32 0.0, %v1958
      %v1960 = vpop.f32.mrb[0].mxu0
      %v1961 = vpop.f32.mrb[0].mxu0
      %v1962 = vadd.f32 0.0, %v1961
      %v1963 = vpop.f32.mrb[0].mxu0
      %1964 = vdwg.mxu0
      %v1965 = vadd.f32 %v1838, %v1935
      %v1966 = vadd.f32 %v1839, %v1938
      %v1967 = vadd.f32 %v1840, %v1943
      %v1968 = vadd.f32 %v1841, %v1946
      %v1969 = vadd.f32 %v1842, %v1951
      %v1970 = vadd.f32 %v1843, %v1954
      %v1971 = vadd.f32 %v1844, %v1959
      %v1972 = vadd.f32 %v1845, %v1962
      %s1973 = scalar_lea.vmem %s3, 192
      %v1974 = vld [vmem:[%s1973] sm:$0xf]
      %v1975 = vld [vmem:[%s1973 + $0x4] sm:$0xf]
      %v1976 = vld [vmem:[%s1973 + $0x8] sm:$0xf]
      %v1977 = vld [vmem:[%s1973 + $0xc] sm:$0xf]
      %v1978 = vld [vmem:[%s1973 + $0x10] sm:$0xf]
      %v1979 = vld [vmem:[%s1973 + $0x14] sm:$0xf]
      %v1980 = vld [vmem:[%s1973 + $0x18] sm:$0xf]
      %v1981 = vld [vmem:[%s1973 + $0x1c] sm:$0xf]
      %v1990 = vunpack.c.l.b16 %v1974
      %v1991 = vunpack.c.l.b16 %v1975
      %v1992 = vunpack.c.l.b16 %v1976
      %v1993 = vunpack.c.l.b16 %v1977
      %v1994 = vunpack.c.l.b16 %v1978
      %v1995 = vunpack.c.l.b16 %v1979
      %v1996 = vunpack.c.l.b16 %v1980
      %v1997 = vunpack.c.l.b16 %v1981
      %v1998 = vpack.c.b16 %v1991, %v1990
      %v1999 = vpack.c.b16 %v1993, %v1992
      %v2000 = vpack.c.b16 %v1995, %v1994
      %v2001 = vpack.c.b16 %v1997, %v1996
      %2002 = vrot.lane.b32.xlu0 %v1245, 122
      %v2003 = vpop.permute.xlu0 %2002
      %2004 = vrot.lane.b32.xlu0 %v1256, 122
      %v2005 = vpop.permute.xlu0 %2004
      %2006 = vrot.lane.b32.xlu0 %v1246, 122
      %v2007 = vpop.permute.xlu0 %2006
      %2008 = vrot.lane.b32.xlu0 %v1257, 122
      %v2009 = vpop.permute.xlu0 %2008
      %vm2010 = vcmask 998400
      %v2011 = vsel %vm2010, %v2003, %v2005
      %v2012 = vsel %vm2010, %v2007, %v2009
      %v2016 = vsel %vm722, %v1998, 0
      %v2019 = vsel %vm722, %v1999, 0
      %v2022 = vsel %vm722, %v2000, 0
      %v2025 = vsel %vm722, %v2001, 0
      %2027 = vmatprep.subr.bf16.mxu0 0
      %2028 = vmatpush1.bf16.msra.mxu0 %v2011
      %2029 = vmatprep.subr.bf16.mxu0 0
      %2030 = vmatpush1.bf16.msra.mxu0 %v2012
      %2031 = vmatprep.subr.bf16.mxu0 0
      %2032 = vmatpush1.bf16.msra.mxu0 0
      %2033 = vmatprep.subr.bf16.mxu0 0
      %2034 = vmatpush1.bf16.msra.mxu0 0
      %2035 = vmatprep.subr.bf16.mxu0 0
      %2036 = vmatpush1.bf16.msra.mxu0 0
      %2037 = vmatprep.subr.bf16.mxu0 0
      %2038 = vmatpush1.bf16.msra.mxu0 0
      %2039 = vmatprep.subr.bf16.mxu0 0
      %2040 = vmatpush1.bf16.msra.mxu0 0
      %2041 = vmatprep.subr.bf16.mxu0 0
      %2042 = vmatpush1.bf16.msra.mxu0 0
      %2043 = vmatprep.subr.bf16.mxu0 0
      %2044 = vmatpush1.bf16.msra.mxu0 0
      %2045 = vmatprep.subr.bf16.mxu0 0
      %2046 = vmatpush1.bf16.msra.mxu0 0
      %2047 = vmatprep.subr.bf16.mxu0 0
      %2048 = vmatpush1.bf16.msra.mxu0 0
      %2049 = vmatprep.subr.bf16.mxu0 0
      %2050 = vmatpush1.bf16.msra.mxu0 0
      %2051 = vmatprep.subr.bf16.mxu0 0
      %2052 = vmatpush1.bf16.msra.mxu0 0
      %2053 = vmatprep.subr.bf16.mxu0 0
      %2054 = vmatpush1.bf16.msra.mxu0 0
      %2055 = vmatprep.subr.bf16.mxu0 0
      %2056 = vmatpush1.bf16.msra.mxu0 0
      %2057 = vmatprep.subr.bf16.mxu0 0
      %2058 = vmatpush1.bf16.msra.mxu0 0
      %2059 = vmatprep.mubr.bf16.mxu0 0
      %2060 = vmatmul.mubr.bf16.gmra.mrb[0].mxu0 %v2016
      %v2061 = vpop.f32.mrb[0].mxu0
      %v2062 = vadd.f32 0.0, %v2061
      %v2063 = vpop.f32.mrb[0].mxu0
      %v2064 = vpop.f32.mrb[0].mxu0
      %v2065 = vadd.f32 0.0, %v2064
      %v2066 = vpop.f32.mrb[0].mxu0
      %2067 = vmatprep.mubr.bf16.mxu0 0
      %2068 = vmatmul.mubr.bf16.gmra.mrb[0].mxu0 %v2019
      %v2069 = vpop.f32.mrb[0].mxu0
      %v2070 = vadd.f32 0.0, %v2069
      %v2071 = vpop.f32.mrb[0].mxu0
      %v2072 = vpop.f32.mrb[0].mxu0
      %v2073 = vadd.f32 0.0, %v2072
      %v2074 = vpop.f32.mrb[0].mxu0
      %2075 = vmatprep.mubr.bf16.mxu0 0
      %2076 = vmatmul.mubr.bf16.gmra.mrb[0].mxu0 %v2022
      %v2077 = vpop.f32.mrb[0].mxu0
      %v2078 = vadd.f32 0.0, %v2077
      %v2079 = vpop.f32.mrb[0].mxu0
      %v2080 = vpop.f32.mrb[0].mxu0
      %v2081 = vadd.f32 0.0, %v2080
      %v2082 = vpop.f32.mrb[0].mxu0
      %2083 = vmatprep.mubr.bf16.mxu0 0
      %2084 = vmatmul.mubr.bf16.gmra.mrb[0].mxu0 %v2025
      %v2085 = vpop.f32.mrb[0].mxu0
      %v2086 = vadd.f32 0.0, %v2085
      %v2087 = vpop.f32.mrb[0].mxu0
      %v2088 = vpop.f32.mrb[0].mxu0
      %v2089 = vadd.f32 0.0, %v2088
      %v2090 = vpop.f32.mrb[0].mxu0
      %2091 = vdwg.mxu0
      %v2092 = vadd.f32 %v1965, %v2062
      %v2093 = vadd.f32 %v1966, %v2065
      %v2094 = vadd.f32 %v1967, %v2070
      %v2095 = vadd.f32 %v1968, %v2073
      %v2096 = vadd.f32 %v1969, %v2078
      %v2097 = vadd.f32 %v1970, %v2081
      %v2098 = vadd.f32 %v1971, %v2086
      %v2099 = vadd.f32 %v1972, %v2089
      %v2100 = vld [vmem:[%s6] sm:$0xff]
      %v2101 = vld [vmem:[%s6 + $0x8] sm:$0xff]
      %v2102 = vld [vmem:[%s6 + $0x10] sm:$0xff]
      %v2103 = vld [vmem:[%s6 + $0x18] sm:$0xff]
      %v2104 = vld [vmem:[%s6 + $0x20] sm:$0xff]
      %v2105 = vld [vmem:[%s6 + $0x28] sm:$0xff]
      %v2106 = vld [vmem:[%s6 + $0x30] sm:$0xff]
      %v2107 = vld [vmem:[%s6 + $0x38] sm:$0xff]
      %2109 = vset.pattern.permute.xlu0 0
      %2110 = vperm.xlu0 %2109, %v2100
      %v2111 = vpop.permute.xlu0 %2110
      %2114 = vset.pattern.permute.xlu0 0
      %2115 = vperm.xlu0 %2114, %v2101
      %v2116 = vpop.permute.xlu0 %2115
      %2119 = vset.pattern.permute.xlu0 0
      %2120 = vperm.xlu0 %2119, %v2102
      %v2121 = vpop.permute.xlu0 %2120
      %2124 = vset.pattern.permute.xlu0 0
      %2125 = vperm.xlu0 %2124, %v2103
      %v2126 = vpop.permute.xlu0 %2125
      %2129 = vset.pattern.permute.xlu0 0
      %2130 = vperm.xlu0 %2129, %v2104
      %v2131 = vpop.permute.xlu0 %2130
      %2134 = vset.pattern.permute.xlu0 0
      %2135 = vperm.xlu0 %2134, %v2105
      %v2136 = vpop.permute.xlu0 %2135
      %2139 = vset.pattern.permute.xlu0 0
      %2140 = vperm.xlu0 %2139, %v2106
      %v2141 = vpop.permute.xlu0 %2140
      %2144 = vset.pattern.permute.xlu0 0
      %2145 = vperm.xlu0 %2144, %v2107
      %v2146 = vpop.permute.xlu0 %2145
      %v2148 = vadd.f32 %v2092, %v2111
      %v2149 = vadd.f32 %v2093, %v2116
      %v2150 = vadd.f32 %v2094, %v2121
      %v2151 = vadd.f32 %v2095, %v2126
      %v2152 = vadd.f32 %v2096, %v2131
      %v2153 = vadd.f32 %v2097, %v2136
      %v2154 = vadd.f32 %v2098, %v2141
      %v2155 = vadd.f32 %v2099, %v2146
      %v2156 = vmax.f32 %v2148, 0.0
      %v2157 = vmax.f32 %v2149, 0.0
      %v2158 = vmax.f32 %v2150, 0.0
      %v2159 = vmax.f32 %v2151, 0.0
      %v2160 = vmax.f32 %v2152, 0.0
      %v2161 = vmax.f32 %v2153, 0.0
      %v2162 = vmax.f32 %v2154, 0.0
      %v2163 = vmax.f32 %v2155, 0.0
      %2164 = vst [vmem:[%s312] sm:$0xff] %v2156
      %2165 = vst [vmem:[%s312 + $0x8] sm:$0xff] %v2157
      %2166 = vst [vmem:[%s312 + $0x10] sm:$0xff] %v2158
      %2167 = vst [vmem:[%s312 + $0x18] sm:$0xff] %v2159
      %2168 = vst [vmem:[%s312 + $0x20] sm:$0xff] %v2160
      %2169 = vst [vmem:[%s312 + $0x28] sm:$0xff] %v2161
      %2170 = vst [vmem:[%s312 + $0x30] sm:$0xff] %v2162
      %2171 = vst [vmem:[%s312 + $0x38] sm:$0xff] %v2163
      %p2172 = scmp.lt.s32.totalorder %s22, 1
      %s2173 = scalar_select %p2172, %s22, 1
      %p2174 = scmp.lt.s32.totalorder %s23, 0
      %s2175 = scalar_select %p2174, %s23, 0
      %s2176 = smul.addr %s2173, 8
      %s2177 = sadd.s32 %s2175, %s2176
      %s2178 = smul.addr %s2177, 8
      %s2179 = scalar_lea.vmem %s7, %s2178
      // Predicated region
      $region57: #{cnn_block_forward.1} parent=47 // pred_check
        %p2180 = pneg %p204
      $region58: #{cnn_block_forward.1} parent=47 // pred_check_branch
        %2182 = sbr.rel (%p2180) target = $region60
      $region59: #{cnn_block_forward.1} parent=47 // pred_region
        _
      $region60: #{cnn_block_forward.1} parent=47 // pred_fallthru
        _
    $region48: #{cnn_block_forward.1} parent=5 // pred_fallthru
      _
    %p2183 = scmp.le.s32.totalorder 2, %s13
    // Predicated region
    $region61: #{cnn_block_forward.1} parent=5 // pred_check
      %p2184 = pneg %p2183
    $region62: #{cnn_block_forward.1} parent=5 // pred_check_branch
      %2186 = sbr.rel (%p2184) target = $region64
    $region63: #{cnn_block_forward.1} parent=5 // pred_region
      %s2187 = ssub.s32 %s13, 2
      // Predicated region
      $region65: #{cnn_block_forward.1} parent=63 // pred_check
        %p2188 = pneg %p210
      $region66: #{cnn_block_forward.1} parent=63 // pred_check_branch
        %2190 = sbr.rel (%p2188) target = $region68
      $region67: #{cnn_block_forward.1} parent=63 // pred_region
        %p2191 = scmp.lt.s32.totalorder %s24, 1
        %s2192 = scalar_select %p2191, %s24, 1
        %p2193 = scmp.lt.s32.totalorder %s25, 0
        %s2194 = scalar_select %p2193, %s25, 0
        %s2195 = smul.addr %s2192, 8
        %s2196 = sadd.s32 %s2194, %s2195
        %s2197 = smul.addr %s2196, 8
        %s2198 = scalar_lea.vmem %s7, %s2197
      $region68: #{cnn_block_forward.1} parent=63 // pred_fallthru
        _
    $region64: #{cnn_block_forward.1} parent=5 // pred_fallthru
      _
  $region6: #{cnn_block_forward.1} parent=0 // loop_footer
    %s17 = sadd.s32 1, %s13
  $region7: #{cnn_block_forward.1} parent=0 // loop_footer_branch
    %12 = sbr.rel target = $region3
  $region8: #{cnn_block_forward.1} parent=0 // loop_exit
    _

</llo_original>
